<compile_context>
chip_gen: v6e
topology: v6e:2x2x1
jax: 0.10.0
libtpu: 0.0.40
codegen_flags: <defaults>
</compile_context>

<pallas_src>
import numpy as np
import jax
import jax.numpy as jnp
from jax.experimental import pallas as pl
from jax.experimental.pallas import tpu as pltpu

LRELU_SLOPE = 0.01          # torch.nn.LeakyReLU default negative_slope
NEG_INF = -1e30
EPS = 1e-5
F32 = jnp.float32
VMEM = pltpu.MemorySpace.VMEM


def _round_up(x, m):
    return (x + m - 1) // m * m


def _lrelu(x):
    return jnp.where(x >= 0, x, LRELU_SLOPE * x)


def _gn_lrelu(y, gamma, beta, p, eps):
    """GroupNorm (centered variance) via a per-group averaging projector P [C, C]."""
    mean = jnp.dot(y, p, preferred_element_type=F32)
    d = y - mean
    var = jnp.dot(d * d, p, preferred_element_type=F32)
    return _lrelu(d * jax.lax.rsqrt(var + eps) * gamma + beta)


# --------------------------------------------------------------------------
# Fused Pallas kernel (whole forward pass, grid=(), 3 inputs, 1 output)
# --------------------------------------------------------------------------
def _make_fused_kernel(meta, seg_offsets, seg_counts, eps):
    n_res = meta["n_res"]
    n_dense_extra = meta["n_dense_extra"]
    c_last = meta["c_last"]
    entries = meta["entries"]          # list of (row_offset, rows, cols)
    idx = meta["idx"]                  # name -> entry index (or name -> {i: entry index})
    num_graphs = len(seg_offsets)

    def kernel(x_ref, a_ref, slab_ref, o_ref):
        def W(name, k=None):
            e = idx[name] if k is None else idx[name][k]
            off, r, c = entries[e]
            return slab_ref[off:off + r, 0:c]       # static slice of the weight slab

        a = a_ref[...]

        # ---- node projection (pos|feature already concatenated + padded on host) ----
        x = jnp.dot(x_ref[...], W("proj_w"), preferred_element_type=F32) + W("proj_b")

        # ---- message passing: lrelu(x @ Ws + (A_mean @ x) @ Wn + b) ----
        # The last layer's concat(res) is folded in here:
        #   concat(res) @ Ws_last       = sum_i res_i @ Ws_rows_i
        #   (A @ concat(res)) @ Wn_last = A @ (sum_i res_i @ Wn_rows_i)
        # with Ws_rows_i / Wn_rows_i host-hstacked into one [C_i, 2*C_last] matrix.
        snw = None
        for i in range(n_res):
            agg = jnp.dot(a, x, preferred_element_type=F32)
            x = _lrelu(jnp.dot(x, W("mp_ws", i), preferred_element_type=F32)
                       + jnp.dot(agg, W("mp_wn", i), preferred_element_type=F32)
                       + W("mp_b", i))
            contrib = jnp.dot(x, W("mp_last_wsn", i), preferred_element_type=F32)
            snw = contrib if snw is None else snw + contrib
        sw = snw[:, :c_last]                          # 128-aligned lane split
        nw = snw[:, c_last:]
        nf = _lrelu(sw + jnp.dot(a, nw, preferred_element_type=F32) + W("mp_last_b"))

        # ---- graph pooling: segment max / mean over contiguous per-graph row blocks ----
        row_ids = jax.lax.broadcasted_iota(jnp.int32, (num_graphs, c_last), 0)
        x1 = jnp.zeros((num_graphs, c_last), F32)     # max-pool rows
        x2 = jnp.zeros((num_graphs, c_last), F32)     # mean-pool rows
        for g, (off, cnt) in enumerate(zip(seg_offsets, seg_counts)):
            seg = nf[off:off + cnt]                   # static row slice
            mx = jnp.max(seg, axis=0, keepdims=True)
            mn = jnp.sum(seg, axis=0, keepdims=True) * (1.0 / cnt)
            sel = row_ids == g
            x1 = jnp.where(sel, mx, x1)
            x2 = jnp.where(sel, mn, x2)

        # ---- dense head; first block consumes concat(max, mean) via split weights ----
        y = (jnp.dot(x1, W("d0_wa"), preferred_element_type=F32)
             + jnp.dot(x2, W("d0_wb"), preferred_element_type=F32)
             + W("d0_b"))
        h = _gn_lrelu(y, W("d0_gamma"), W("d0_beta"), W("d0_p"), eps)

        for k in range(n_dense_extra):
            y = jnp.dot(h, W("dk_w", k), preferred_element_type=F32) + W("dk_b", k)
            h = _gn_lrelu(y, W("dk_gamma", k), W("dk_beta", k), W("dk_p", k), eps)

        # ---- final dense block: no norm / no activation; lane-dense 128-wide store ----
        o_ref[...] = (jnp.dot(h, W("out_w"), preferred_element_type=F32)
                      + W("out_b")).astype(o_ref.dtype)

    return kernel


# --------------------------------------------------------------------------
# Parameters + host-side one-time weight prep (packing into one slab)
# --------------------------------------------------------------------------
def _linear_init(key, fan_in, fan_out):
    k1, k2 = jax.random.split(key)
    bound = 1.0 / float(np.sqrt(fan_in))
    w = jax.random.uniform(k1, (fan_in, fan_out), F32, -bound, bound)
    b = jax.random.uniform(k2, (1, fan_out), F32, -bound, bound)
    return w, b


def init_graph_encoder_params(key, pos_dim, node_dim, projection_channel,
                              mp_channels, user_dense_channels, num_norm_groups):
    node_feature_dim = pos_dim + node_dim          # pass_pos=True, pass_feature=True
    params = {"num_norm_groups": num_norm_groups}
    key, k = jax.random.split(key)
    params["proj_w"], params["proj_b"] = _linear_init(k, node_feature_dim, projection_channel)

    mp_path = [projection_channel] + list(mp_channels)
    mp_layers = []
    for i in range(len(mp_channels) - 1):
        cin, cout = mp_path[i], mp_path[i + 1]
        key, k1, k2 = jax.random.split(key, 3)
        ws, b = _linear_init(k1, cin, cout)
        wn, _ = _linear_init(k2, cin, cout)
        mp_layers.append({"ws": ws, "wn": wn, "b": b})
    cin_last = sum(mp_channels[:-1])                   # last layer input = concat(res)
    key, k1, k2 = jax.random.split(key, 3)
    ws, b = _linear_init(k1, cin_last, mp_channels[-1])
    wn, _ = _linear_init(k2, cin_last, mp_channels[-1])
    mp_layers.append({"ws": ws, "wn": wn, "b": b})
    params["mp"] = mp_layers

    dense_channels = [2 * mp_channels[-1]] + list(user_dense_channels)
    dense = []
    for i in range(len(dense_channels) - 2):
        key, k = jax.random.split(key)
        w, b = _linear_init(k, dense_channels[i], dense_channels[i + 1])
        dense.append({"w": w, "b": b,
                      "gamma": jnp.ones((1, dense_channels[i + 1]), F32),
                      "beta": jnp.zeros((1, dense_channels[i + 1]), F32)})
    key, k = jax.random.split(key)
    w, b = _linear_init(k, dense_channels[-2], dense_channels[-1])
    dense.append({"w": w, "b": b})                     # final block: no norm / no activation
    params["dense"] = dense
    return params


def prepare_fused_inputs(params, pos_dim, node_dim):
    """One-time host prep: split/fold/hstack weights and pack them into ONE f32 slab."""
    mp, dense, ng = params["mp"], params["dense"], params["num_norm_groups"]
    assert len(dense) >= 2, "fused kernel expects at least one normalized dense block"
    n_res = len(mp) - 1
    in_dim = pos_dim + node_dim
    in_pad = _round_up(in_dim, 8)
    c_last = int(mp[-1]["ws"].shape[1])
    out_c = int(dense[-1]["w"].shape[1])
    out_pad = _round_up(out_c, 128)

    def gn_proj(c):
        assert c % ng == 0, "dense width must be divisible by num_norm_groups"
        gsz = c // ng
        gm = np.zeros((ng, c), np.float32)
        for g in range(ng):
            gm[g, g * gsz:(g + 1) * gsz] = 1.0
        return (gm.T / gsz) @ gm                       # [C, C] per-group averaging projector

    blocks = []                                        # list of (key, np.float32 2-D array)

    def add(key, arr):
        arr = np.asarray(arr, np.float32)
        if arr.ndim == 1:
            arr = arr[None, :]
        blocks.append((key, arr))

    # node projection (rows padded to in_pad so it matches the zero-padded x_in)
    pw = np.zeros((in_pad, int(params["proj_w"].shape[1])), np.float32)
    pw[:in_dim] = np.asarray(params["proj_w"])
    add(("proj_w",), pw)
    add(("proj_b",), params["proj_b"])

    for i, lyr in enumerate(mp[:-1]):
        add(("mp_ws", i), lyr["ws"])
        add(("mp_wn", i), lyr["wn"])
        add(("mp_b", i), lyr["b"])

    widths = [int(l["ws"].shape[1]) for l in mp[:-1]]
    offs = np.concatenate([[0], np.cumsum(widths)]).astype(int)
    ws_l, wn_l = np.asarray(mp[-1]["ws"]), np.asarray(mp[-1]["wn"])
    for i in range(n_res):
        add(("mp_last_wsn", i),
            np.concatenate([ws_l[offs[i]:offs[i + 1]], wn_l[offs[i]:offs[i + 1]]], axis=1))
    add(("mp_last_b",), mp[-1]["b"])

    d0 = dense[0]
    w0 = np.asarray(d0["w"])
    add(("d0_wa",), w0[:c_last])
    add(("d0_wb",), w0[c_last:])
    add(("d0_b",), d0["b"])
    add(("d0_gamma",), d0["gamma"])
    add(("d0_beta",), d0["beta"])
    add(("d0_p",), gn_proj(int(w0.shape[1])))

    for k, lyr in enumerate(dense[1:-1]):
        add(("dk_w", k), lyr["w"])
        add(("dk_b", k), lyr["b"])
        add(("dk_gamma", k), lyr["gamma"])
        add(("dk_beta", k), lyr["beta"])
        add(("dk_p", k), gn_proj(int(lyr["w"].shape[1])))

    dl = dense[-1]
    wout = np.zeros((int(dl["w"].shape[0]), out_pad), np.float32)
    wout[:, :out_c] = np.asarray(dl["w"])
    bout = np.zeros((1, out_pad), np.float32)
    bout[:, :out_c] = np.asarray(dl["b"])
    add(("out_w",), wout)
    add(("out_b",), bout)

    # ---- pack: each entry at an 8-aligned row offset, slab width lane-dense ----
    width = _round_up(max(int(a.shape[1]) for _, a in blocks), 128)
    entries, idx, rows = [], {}, 0
    for key, arr in blocks:
        r, c = arr.shape
        entries.append((rows, r, c))
        if len(key) == 1:
            idx[key[0]] = len(entries) - 1
        else:
            idx.setdefault(key[0], {})[key[1]] = len(entries) - 1
        rows += _round_up(r, 8)
    slab = np.zeros((_round_up(rows, 8), width), np.float32)
    for (off, r, c), (_, arr) in zip(entries, blocks):
        slab[off:off + r, :c] = arr

    meta = dict(n_res=n_res, n_dense_extra=len(dense) - 2, c_last=c_last,
                out_c=out_c, out_pad=out_pad, in_dim=in_dim, in_pad=in_pad,
                entries=entries, idx=idx)
    return jnp.asarray(slab), meta


def graph_encoder_forward(slab, meta, pos, feature, a_mean, seg_offsets, seg_counts):
    """Entire GraphEncoder forward = ONE pallas_call with 3 inputs (x_in, A_mean, slab)."""
    assert all(c > 0 for c in seg_counts), "empty graphs are not supported"
    n = int(pos.shape[0])
    # host-side concat(pos, feature) + zero-pad to in_pad lanes (free XLA op)
    x_in = jnp.zeros((n, meta["in_pad"]), F32)
    x_in = x_in.at[:, :pos.shape[1]].set(pos.astype(F32))
    x_in = x_in.at[:, pos.shape[1]:meta["in_dim"]].set(feature.astype(F32))

    num_graphs = len(seg_offsets)
    kernel = _make_fused_kernel(meta, tuple(int(o) for o in seg_offsets),
                                tuple(int(c) for c in seg_counts), EPS)
    out = pl.pallas_call(
        kernel,
        out_shape=jax.ShapeDtypeStruct((num_graphs, meta["out_pad"]), F32),
        in_specs=[pl.BlockSpec(memory_space=VMEM)] * 3,
        out_specs=pl.BlockSpec(memory_space=VMEM),
    )(x_in, a_mean.astype(F32), slab)
    return out[:, :meta["out_c"]]


# --------------------------------------------------------------------------
# pure-JAX reference (natural formulation, for correctness check)
# --------------------------------------------------------------------------
def reference_forward(params, pos, feature, a_mean, mask, mask_t, invcnt):
    x = jnp.concatenate([pos, feature], axis=-1)
    x = x @ params["proj_w"] + params["proj_b"]
    res = []
    for lyr in params["mp"][:-1]:
        agg = a_mean @ x
        x = _lrelu(x @ lyr["ws"] + agg @ lyr["wn"] + lyr["b"])
        res.append(x)
    xc = jnp.concatenate(res, axis=-1)
    last = params["mp"][-1]
    nf = _lrelu(xc @ last["ws"] + (a_mean @ xc) @ last["wn"] + last["b"])

    G = mask.shape[0]
    x1 = jnp.stack([jnp.max(jnp.where(mask_t[:, g:g + 1] > 0.5, nf, NEG_INF), axis=0)
                    for g in range(G)], axis=0)
    x2 = (mask @ nf) * invcnt
    x = jnp.concatenate([x1, x2], axis=-1)

    ng = params["num_norm_groups"]
    for lyr in params["dense"][:-1]:
        y = x @ lyr["w"] + lyr["b"]
        B, C = y.shape
        yg = y.reshape(B, ng, C // ng)
        mean = jnp.mean(yg, axis=-1, keepdims=True)
        var = jnp.mean((yg - mean) ** 2, axis=-1, keepdims=True)
        yn = ((yg - mean) / jnp.sqrt(var + EPS)).reshape(B, C)
        x = _lrelu(yn * lyr["gamma"] + lyr["beta"])
    last = params["dense"][-1]
    return x @ last["w"] + last["b"]


# --------------------------------------------------------------------------
# main
# --------------------------------------------------------------------------
if __name__ == "__main__":
    # configuration (small shapes)
    POS_DIM, NODE_DIM = 3, 4
    PROJ = 32
    MP_CHANNELS = [32, 32, 64, 128]        # last MP layer input = 32+32+64 = 128
    DENSE_CHANNELS = [64, 32]
    NUM_NORM_GROUPS = 8
    NODES_PER_GRAPH, NUM_GRAPHS = 8, 2
    N = NODES_PER_GRAPH * NUM_GRAPHS

    key = jax.random.PRNGKey(0)
    kpos, kfeat, kparam = jax.random.split(key, 3)
    pos = jax.random.normal(kpos, (N, POS_DIM), F32)
    feature = jax.random.normal(kfeat, (N, NODE_DIM), F32)

    # batch assignment (sorted / contiguous per graph) + edge_index (ring, both directions)
    batch = np.repeat(np.arange(NUM_GRAPHS), NODES_PER_GRAPH).astype(np.int32)
    src, dst = [], []
    for g in range(NUM_GRAPHS):
        off = g * NODES_PER_GRAPH
        for i in range(NODES_PER_GRAPH):
            a, bnode = off + i, off + (i + 1) % NODES_PER_GRAPH
            src += [a, bnode]
            dst += [bnode, a]
    edge_index = np.stack([np.array(src, np.int32), np.array(dst, np.int32)])  # [2, E]

    # dense row-normalized adjacency (mean aggregation over incoming edges)
    A = np.zeros((N, N), np.float32)
    A[edge_index[1], edge_index[0]] = 1.0
    deg = np.maximum(A.sum(-1, keepdims=True), 1.0)
    a_mean = jnp.asarray(A / deg)

    # per-graph contiguous row segments (trace-time constants for the fused kernel)
    assert np.all(np.diff(batch) >= 0), "nodes must be sorted by batch"
    seg_counts = [int((batch == g).sum()) for g in range(NUM_GRAPHS)]
    seg_offsets = [0] + list(np.cumsum(seg_counts)[:-1].astype(int))

    # pooling masks only needed by the pure-JAX reference
    mask_np = (batch[None, :] == np.arange(NUM_GRAPHS)[:, None]).astype(np.float32)  # [G, N]
    invcnt_np = 1.0 / np.maximum(mask_np.sum(-1, keepdims=True), 1.0)
    mask, mask_t, invcnt = jnp.asarray(mask_np), jnp.asarray(mask_np.T), jnp.asarray(invcnt_np)

    params = init_graph_encoder_params(kparam, POS_DIM, NODE_DIM, PROJ,
                                       MP_CHANNELS, DENSE_CHANNELS, NUM_NORM_GROUPS)
    slab, meta = prepare_fused_inputs(params, POS_DIM, NODE_DIM)

    out = graph_encoder_forward(slab, meta, pos, feature, a_mean, seg_offsets, seg_counts)
    out = jax.block_until_ready(out)

    ref = jax.block_until_ready(
        reference_forward(params, pos, feature, a_mean, mask, mask_t, invcnt))

    assert out.shape == (NUM_GRAPHS, DENSE_CHANNELS[-1]), out.shape
    # the fused kernel reassociates matmuls (weight row-splits / hstacks, A@(X@W),
    # GroupNorm projector), changing fp summation order marginally.
    assert np.allclose(np.asarray(out), np.asarray(ref), rtol=1e-3, atol=1e-3), (
        float(np.max(np.abs(np.asarray(out) - np.asarray(ref)))))
    print("KERNEL_OK")
</pallas_src>

<mosaic_0001>
module attributes {stable_mosaic.version = 11 : i64} {
  func.func @kernel(%arg0: memref<16x8xf32, #tpu.memory_space<vmem>>, %arg1: memref<16x16xf32, #tpu.memory_space<vmem>>, %arg2: memref<784x256xf32, #tpu.memory_space<vmem>>, %arg3: memref<2x128xf32, #tpu.memory_space<vmem>>) attributes {dimension_semantics = [], scalar_prefetch = 0 : i64, scratch_operands = 0 : i64, tpu.core_type = #tpu.core_type<tc>} {
    %c0 = arith.constant 0 : index
    %c0_0 = arith.constant 0 : index
    %0 = vector.load %arg1[%c0, %c0_0] : memref<16x16xf32, #tpu.memory_space<vmem>>, vector<16x16xf32>
    %c0_1 = arith.constant 0 : index
    %c0_2 = arith.constant 0 : index
    %1 = vector.load %arg0[%c0_1, %c0_2] : memref<16x8xf32, #tpu.memory_space<vmem>>, vector<16x8xf32>
    %c0_3 = arith.constant 0 : index
    %c0_4 = arith.constant 0 : index
    %2 = vector.load %arg2[%c0_3, %c0_4] : memref<784x256xf32, #tpu.memory_space<vmem>>, vector<8x32xf32>
    %cst = arith.constant dense<0.000000e+00> : vector<16x32xf32>
    %3 = tpu.matmul %1, %2, %cst {dimension_numbers = #tpu.dot_dimension_numbers<[1], [0], [0], [1], [0, 0, 1, 1], [], []>} : vector<16x8xf32>, vector<8x32xf32>, vector<16x32xf32> -> vector<16x32xf32>
    %c8 = arith.constant 8 : index
    %c0_5 = arith.constant 0 : index
    %4 = vector.load %arg2[%c8, %c0_5] : memref<784x256xf32, #tpu.memory_space<vmem>>, vector<1x32xf32>
    %5 = vector.broadcast %4 : vector<1x32xf32> to vector<16x32xf32>
    %6 = arith.addf %3, %5 : vector<16x32xf32>
    %cst_6 = arith.constant dense<0.000000e+00> : vector<16x32xf32>
    %7 = tpu.matmul %0, %6, %cst_6 {dimension_numbers = #tpu.dot_dimension_numbers<[1], [0], [0], [1], [0, 0, 1, 1], [], []>} : vector<16x16xf32>, vector<16x32xf32>, vector<16x32xf32> -> vector<16x32xf32>
    %c16 = arith.constant 16 : index
    %c0_7 = arith.constant 0 : index
    %8 = vector.load %arg2[%c16, %c0_7] : memref<784x256xf32, #tpu.memory_space<vmem>>, vector<32x32xf32>
    %cst_8 = arith.constant dense<0.000000e+00> : vector<16x32xf32>
    %9 = tpu.matmul %6, %8, %cst_8 {dimension_numbers = #tpu.dot_dimension_numbers<[1], [0], [0], [1], [0, 0, 1, 1], [], []>} : vector<16x32xf32>, vector<32x32xf32>, vector<16x32xf32> -> vector<16x32xf32>
    %c48 = arith.constant 48 : index
    %c0_9 = arith.constant 0 : index
    %10 = vector.load %arg2[%c48, %c0_9] : memref<784x256xf32, #tpu.memory_space<vmem>>, vector<32x32xf32>
    %cst_10 = arith.constant dense<0.000000e+00> : vector<16x32xf32>
    %11 = tpu.matmul %7, %10, %cst_10 {dimension_numbers = #tpu.dot_dimension_numbers<[1], [0], [0], [1], [0, 0, 1, 1], [], []>} : vector<16x32xf32>, vector<32x32xf32>, vector<16x32xf32> -> vector<16x32xf32>
    %12 = arith.addf %9, %11 : vector<16x32xf32>
    %c80 = arith.constant 80 : index
    %c0_11 = arith.constant 0 : index
    %13 = vector.load %arg2[%c80, %c0_11] : memref<784x256xf32, #tpu.memory_space<vmem>>, vector<1x32xf32>
    %14 = vector.broadcast %13 : vector<1x32xf32> to vector<16x32xf32>
    %15 = arith.addf %12, %14 : vector<16x32xf32>
    %cst_12 = arith.constant 0.000000e+00 : f32
    %16 = vector.broadcast %cst_12 : f32 to vector<16x32xf32>
    %17 = arith.cmpf oge, %15, %16 : vector<16x32xf32>
    %cst_13 = arith.constant 0.00999999977 : f32
    %18 = vector.broadcast %cst_13 : f32 to vector<16x32xf32>
    %19 = arith.mulf %18, %15 : vector<16x32xf32>
    %20 = arith.select %17, %15, %19 : vector<16x32xi1>, vector<16x32xf32>
    %c232 = arith.constant 232 : index
    %c0_14 = arith.constant 0 : index
    %21 = vector.load %arg2[%c232, %c0_14] : memref<784x256xf32, #tpu.memory_space<vmem>>, vector<32x256xf32>
    %cst_15 = arith.constant dense<0.000000e+00> : vector<16x256xf32>
    %22 = tpu.matmul %20, %21, %cst_15 {dimension_numbers = #tpu.dot_dimension_numbers<[1], [0], [0], [1], [0, 0, 1, 1], [], []>} : vector<16x32xf32>, vector<32x256xf32>, vector<16x256xf32> -> vector<16x256xf32>
    %cst_16 = arith.constant dense<0.000000e+00> : vector<16x32xf32>
    %23 = tpu.matmul %0, %20, %cst_16 {dimension_numbers = #tpu.dot_dimension_numbers<[1], [0], [0], [1], [0, 0, 1, 1], [], []>} : vector<16x16xf32>, vector<16x32xf32>, vector<16x32xf32> -> vector<16x32xf32>
    %c88 = arith.constant 88 : index
    %c0_17 = arith.constant 0 : index
    %24 = vector.load %arg2[%c88, %c0_17] : memref<784x256xf32, #tpu.memory_space<vmem>>, vector<32x32xf32>
    %cst_18 = arith.constant dense<0.000000e+00> : vector<16x32xf32>
    %25 = tpu.matmul %20, %24, %cst_18 {dimension_numbers = #tpu.dot_dimension_numbers<[1], [0], [0], [1], [0, 0, 1, 1], [], []>} : vector<16x32xf32>, vector<32x32xf32>, vector<16x32xf32> -> vector<16x32xf32>
    %c120 = arith.constant 120 : index
    %c0_19 = arith.constant 0 : index
    %26 = vector.load %arg2[%c120, %c0_19] : memref<784x256xf32, #tpu.memory_space<vmem>>, vector<32x32xf32>
    %cst_20 = arith.constant dense<0.000000e+00> : vector<16x32xf32>
    %27 = tpu.matmul %23, %26, %cst_20 {dimension_numbers = #tpu.dot_dimension_numbers<[1], [0], [0], [1], [0, 0, 1, 1], [], []>} : vector<16x32xf32>, vector<32x32xf32>, vector<16x32xf32> -> vector<16x32xf32>
    %28 = arith.addf %25, %27 : vector<16x32xf32>
    %c152 = arith.constant 152 : index
    %c0_21 = arith.constant 0 : index
    %29 = vector.load %arg2[%c152, %c0_21] : memref<784x256xf32, #tpu.memory_space<vmem>>, vector<1x32xf32>
    %30 = vector.broadcast %29 : vector<1x32xf32> to vector<16x32xf32>
    %31 = arith.addf %28, %30 : vector<16x32xf32>
    %cst_22 = arith.constant 0.000000e+00 : f32
    %32 = vector.broadcast %cst_22 : f32 to vector<16x32xf32>
    %33 = arith.cmpf oge, %31, %32 : vector<16x32xf32>
    %cst_23 = arith.constant 0.00999999977 : f32
    %34 = vector.broadcast %cst_23 : f32 to vector<16x32xf32>
    %35 = arith.mulf %34, %31 : vector<16x32xf32>
    %36 = arith.select %33, %31, %35 : vector<16x32xi1>, vector<16x32xf32>
    %c264 = arith.constant 264 : index
    %c0_24 = arith.constant 0 : index
    %37 = vector.load %arg2[%c264, %c0_24] : memref<784x256xf32, #tpu.memory_space<vmem>>, vector<32x256xf32>
    %cst_25 = arith.constant dense<0.000000e+00> : vector<16x256xf32>
    %38 = tpu.matmul %36, %37, %cst_25 {dimension_numbers = #tpu.dot_dimension_numbers<[1], [0], [0], [1], [0, 0, 1, 1], [], []>} : vector<16x32xf32>, vector<32x256xf32>, vector<16x256xf32> -> vector<16x256xf32>
    %39 = arith.addf %22, %38 : vector<16x256xf32>
    %cst_26 = arith.constant dense<0.000000e+00> : vector<16x32xf32>
    %40 = tpu.matmul %0, %36, %cst_26 {dimension_numbers = #tpu.dot_dimension_numbers<[1], [0], [0], [1], [0, 0, 1, 1], [], []>} : vector<16x16xf32>, vector<16x32xf32>, vector<16x32xf32> -> vector<16x32xf32>
    %c160 = arith.constant 160 : index
    %c0_27 = arith.constant 0 : index
    %41 = vector.load %arg2[%c160, %c0_27] : memref<784x256xf32, #tpu.memory_space<vmem>>, vector<32x64xf32>
    %cst_28 = arith.constant dense<0.000000e+00> : vector<16x64xf32>
    %42 = tpu.matmul %36, %41, %cst_28 {dimension_numbers = #tpu.dot_dimension_numbers<[1], [0], [0], [1], [0, 0, 1, 1], [], []>} : vector<16x32xf32>, vector<32x64xf32>, vector<16x64xf32> -> vector<16x64xf32>
    %c192 = arith.constant 192 : index
    %c0_29 = arith.constant 0 : index
    %43 = vector.load %arg2[%c192, %c0_29] : memref<784x256xf32, #tpu.memory_space<vmem>>, vector<32x64xf32>
    %cst_30 = arith.constant dense<0.000000e+00> : vector<16x64xf32>
    %44 = tpu.matmul %40, %43, %cst_30 {dimension_numbers = #tpu.dot_dimension_numbers<[1], [0], [0], [1], [0, 0, 1, 1], [], []>} : vector<16x32xf32>, vector<32x64xf32>, vector<16x64xf32> -> vector<16x64xf32>
    %45 = arith.addf %42, %44 : vector<16x64xf32>
    %c224 = arith.constant 224 : index
    %c0_31 = arith.constant 0 : index
    %46 = vector.load %arg2[%c224, %c0_31] : memref<784x256xf32, #tpu.memory_space<vmem>>, vector<1x64xf32>
    %47 = vector.broadcast %46 : vector<1x64xf32> to vector<16x64xf32>
    %48 = arith.addf %45, %47 : vector<16x64xf32>
    %cst_32 = arith.constant 0.000000e+00 : f32
    %49 = vector.broadcast %cst_32 : f32 to vector<16x64xf32>
    %50 = arith.cmpf oge, %48, %49 : vector<16x64xf32>
    %cst_33 = arith.constant 0.00999999977 : f32
    %51 = vector.broadcast %cst_33 : f32 to vector<16x64xf32>
    %52 = arith.mulf %51, %48 : vector<16x64xf32>
    %53 = arith.select %50, %48, %52 : vector<16x64xi1>, vector<16x64xf32>
    %c296 = arith.constant 296 : index
    %c0_34 = arith.constant 0 : index
    %54 = vector.load %arg2[%c296, %c0_34] : memref<784x256xf32, #tpu.memory_space<vmem>>, vector<64x256xf32>
    %cst_35 = arith.constant dense<0.000000e+00> : vector<16x256xf32>
    %55 = tpu.matmul %53, %54, %cst_35 {dimension_numbers = #tpu.dot_dimension_numbers<[1], [0], [0], [1], [0, 0, 1, 1], [], []>} : vector<16x64xf32>, vector<64x256xf32>, vector<16x256xf32> -> vector<16x256xf32>
    %56 = arith.addf %39, %55 : vector<16x256xf32>
    %57 = vector.extract_strided_slice %56 {offsets = [0, 0], sizes = [16, 128], strides = [1, 1]} : vector<16x256xf32> to vector<16x128xf32>
    %58 = vector.extract_strided_slice %56 {offsets = [0, 128], sizes = [16, 128], strides = [1, 1]} : vector<16x256xf32> to vector<16x128xf32>
    %cst_36 = arith.constant dense<0.000000e+00> : vector<16x128xf32>
    %59 = tpu.matmul %0, %58, %cst_36 {dimension_numbers = #tpu.dot_dimension_numbers<[1], [0], [0], [1], [0, 0, 1, 1], [], []>} : vector<16x16xf32>, vector<16x128xf32>, vector<16x128xf32> -> vector<16x128xf32>
    %60 = arith.addf %57, %59 : vector<16x128xf32>
    %c360 = arith.constant 360 : index
    %c0_37 = arith.constant 0 : index
    %61 = vector.load %arg2[%c360, %c0_37] : memref<784x256xf32, #tpu.memory_space<vmem>>, vector<1x128xf32>
    %62 = vector.broadcast %61 : vector<1x128xf32> to vector<16x128xf32>
    %63 = arith.addf %60, %62 : vector<16x128xf32>
    %cst_38 = arith.constant 0.000000e+00 : f32
    %64 = vector.broadcast %cst_38 : f32 to vector<16x128xf32>
    %65 = arith.cmpf oge, %63, %64 : vector<16x128xf32>
    %cst_39 = arith.constant 0.00999999977 : f32
    %66 = vector.broadcast %cst_39 : f32 to vector<16x128xf32>
    %67 = arith.mulf %66, %63 : vector<16x128xf32>
    %68 = arith.select %65, %63, %67 : vector<16x128xi1>, vector<16x128xf32>
    %69 = tpu.iota {dimensions = array<i32: 0>} : vector<2x128xi32>
    %cst_40 = arith.constant 0.000000e+00 : f32
    %70 = vector.broadcast %cst_40 : f32 to vector<2x128xf32>
    %cst_41 = arith.constant 0.000000e+00 : f32
    %71 = vector.broadcast %cst_41 : f32 to vector<2x128xf32>
    %72 = vector.extract_strided_slice %68 {offsets = [0, 0], sizes = [8, 128], strides = [1, 1]} : vector<16x128xf32> to vector<8x128xf32>
    %cst_42 = arith.constant dense<0xFF800000> : vector<128xf32>
    %73 = vector.multi_reduction <maximumf>, %72, %cst_42 [0] : vector<8x128xf32> to vector<128xf32>
    %74 = vector.shape_cast %73 : vector<128xf32> to vector<1x128xf32>
    %cst_43 = arith.constant dense<0.000000e+00> : vector<128xf32>
    %75 = vector.multi_reduction <add>, %72, %cst_43 [0] : vector<8x128xf32> to vector<128xf32>
    %76 = vector.shape_cast %75 : vector<128xf32> to vector<1x128xf32>
    %cst_44 = arith.constant 1.250000e-01 : f32
    %77 = vector.broadcast %cst_44 : f32 to vector<1x128xf32>
    %78 = arith.mulf %76, %77 : vector<1x128xf32>
    %c0_i32 = arith.constant 0 : i32
    %79 = vector.broadcast %c0_i32 : i32 to vector<2x128xi32>
    %80 = arith.cmpi eq, %69, %79 : vector<2x128xi32>
    %81 = vector.shape_cast %74 : vector<1x128xf32> to vector<1x128xf32>
    %82 = vector.broadcast %81 : vector<1x128xf32> to vector<2x128xf32>
    %83 = arith.select %80, %82, %70 : vector<2x128xi1>, vector<2x128xf32>
    %84 = vector.shape_cast %78 : vector<1x128xf32> to vector<1x128xf32>
    %85 = vector.broadcast %84 : vector<1x128xf32> to vector<2x128xf32>
    %86 = arith.select %80, %85, %71 : vector<2x128xi1>, vector<2x128xf32>
    %87 = vector.extract_strided_slice %68 {offsets = [8, 0], sizes = [8, 128], strides = [1, 1]} : vector<16x128xf32> to vector<8x128xf32>
    %cst_45 = arith.constant dense<0xFF800000> : vector<128xf32>
    %88 = vector.multi_reduction <maximumf>, %87, %cst_45 [0] : vector<8x128xf32> to vector<128xf32>
    %89 = vector.shape_cast %88 : vector<128xf32> to vector<1x128xf32>
    %cst_46 = arith.constant dense<0.000000e+00> : vector<128xf32>
    %90 = vector.multi_reduction <add>, %87, %cst_46 [0] : vector<8x128xf32> to vector<128xf32>
    %91 = vector.shape_cast %90 : vector<128xf32> to vector<1x128xf32>
    %cst_47 = arith.constant 1.250000e-01 : f32
    %92 = vector.broadcast %cst_47 : f32 to vector<1x128xf32>
    %93 = arith.mulf %91, %92 : vector<1x128xf32>
    %c1_i32 = arith.constant 1 : i32
    %94 = vector.broadcast %c1_i32 : i32 to vector<2x128xi32>
    %95 = arith.cmpi eq, %69, %94 : vector<2x128xi32>
    %96 = vector.shape_cast %89 : vector<1x128xf32> to vector<1x128xf32>
    %97 = vector.broadcast %96 : vector<1x128xf32> to vector<2x128xf32>
    %98 = arith.select %95, %97, %83 : vector<2x128xi1>, vector<2x128xf32>
    %99 = vector.shape_cast %93 : vector<1x128xf32> to vector<1x128xf32>
    %100 = vector.broadcast %99 : vector<1x128xf32> to vector<2x128xf32>
    %101 = arith.select %95, %100, %86 : vector<2x128xi1>, vector<2x128xf32>
    %c368 = arith.constant 368 : index
    %c0_48 = arith.constant 0 : index
    %102 = vector.load %arg2[%c368, %c0_48] : memref<784x256xf32, #tpu.memory_space<vmem>>, vector<128x64xf32>
    %cst_49 = arith.constant dense<0.000000e+00> : vector<2x64xf32>
    %103 = tpu.matmul %98, %102, %cst_49 {dimension_numbers = #tpu.dot_dimension_numbers<[1], [0], [0], [1], [0, 0, 1, 1], [], []>} : vector<2x128xf32>, vector<128x64xf32>, vector<2x64xf32> -> vector<2x64xf32>
    %c496 = arith.constant 496 : index
    %c0_50 = arith.constant 0 : index
    %104 = vector.load %arg2[%c496, %c0_50] : memref<784x256xf32, #tpu.memory_space<vmem>>, vector<128x64xf32>
    %cst_51 = arith.constant dense<0.000000e+00> : vector<2x64xf32>
    %105 = tpu.matmul %101, %104, %cst_51 {dimension_numbers = #tpu.dot_dimension_numbers<[1], [0], [0], [1], [0, 0, 1, 1], [], []>} : vector<2x128xf32>, vector<128x64xf32>, vector<2x64xf32> -> vector<2x64xf32>
    %106 = arith.addf %103, %105 : vector<2x64xf32>
    %c624 = arith.constant 624 : index
    %c0_52 = arith.constant 0 : index
    %107 = vector.load %arg2[%c624, %c0_52] : memref<784x256xf32, #tpu.memory_space<vmem>>, vector<1x64xf32>
    %108 = vector.broadcast %107 : vector<1x64xf32> to vector<2x64xf32>
    %109 = arith.addf %106, %108 : vector<2x64xf32>
    %c632 = arith.constant 632 : index
    %c0_53 = arith.constant 0 : index
    %110 = vector.load %arg2[%c632, %c0_53] : memref<784x256xf32, #tpu.memory_space<vmem>>, vector<1x64xf32>
    %c640 = arith.constant 640 : index
    %c0_54 = arith.constant 0 : index
    %111 = vector.load %arg2[%c640, %c0_54] : memref<784x256xf32, #tpu.memory_space<vmem>>, vector<1x64xf32>
    %c648 = arith.constant 648 : index
    %c0_55 = arith.constant 0 : index
    %112 = vector.load %arg2[%c648, %c0_55] : memref<784x256xf32, #tpu.memory_space<vmem>>, vector<64x64xf32>
    %cst_56 = arith.constant dense<0.000000e+00> : vector<2x64xf32>
    %113 = tpu.matmul %109, %112, %cst_56 {dimension_numbers = #tpu.dot_dimension_numbers<[1], [0], [0], [1], [0, 0, 1, 1], [], []>} : vector<2x64xf32>, vector<64x64xf32>, vector<2x64xf32> -> vector<2x64xf32>
    %114 = arith.subf %109, %113 : vector<2x64xf32>
    %115 = arith.mulf %114, %114 : vector<2x64xf32>
    %cst_57 = arith.constant dense<0.000000e+00> : vector<2x64xf32>
    %116 = tpu.matmul %115, %112, %cst_57 {dimension_numbers = #tpu.dot_dimension_numbers<[1], [0], [0], [1], [0, 0, 1, 1], [], []>} : vector<2x64xf32>, vector<64x64xf32>, vector<2x64xf32> -> vector<2x64xf32>
    %cst_58 = arith.constant 9.99999974E-6 : f32
    %117 = vector.broadcast %cst_58 : f32 to vector<2x64xf32>
    %118 = arith.addf %116, %117 : vector<2x64xf32>
    %119 = math.rsqrt %118 : vector<2x64xf32>
    %120 = arith.mulf %114, %119 : vector<2x64xf32>
    %121 = vector.broadcast %110 : vector<1x64xf32> to vector<2x64xf32>
    %122 = arith.mulf %120, %121 : vector<2x64xf32>
    %123 = vector.broadcast %111 : vector<1x64xf32> to vector<2x64xf32>
    %124 = arith.addf %122, %123 : vector<2x64xf32>
    %cst_59 = arith.constant 0.000000e+00 : f32
    %125 = vector.broadcast %cst_59 : f32 to vector<2x64xf32>
    %126 = arith.cmpf oge, %124, %125 : vector<2x64xf32>
    %cst_60 = arith.constant 0.00999999977 : f32
    %127 = vector.broadcast %cst_60 : f32 to vector<2x64xf32>
    %128 = arith.mulf %127, %124 : vector<2x64xf32>
    %129 = arith.select %126, %124, %128 : vector<2x64xi1>, vector<2x64xf32>
    %c712 = arith.constant 712 : index
    %c0_61 = arith.constant 0 : index
    %130 = vector.load %arg2[%c712, %c0_61] : memref<784x256xf32, #tpu.memory_space<vmem>>, vector<64x128xf32>
    %cst_62 = arith.constant dense<0.000000e+00> : vector<2x128xf32>
    %131 = tpu.matmul %129, %130, %cst_62 {dimension_numbers = #tpu.dot_dimension_numbers<[1], [0], [0], [1], [0, 0, 1, 1], [], []>} : vector<2x64xf32>, vector<64x128xf32>, vector<2x128xf32> -> vector<2x128xf32>
    %c776 = arith.constant 776 : index
    %c0_63 = arith.constant 0 : index
    %132 = vector.load %arg2[%c776, %c0_63] : memref<784x256xf32, #tpu.memory_space<vmem>>, vector<1x128xf32>
    %133 = vector.broadcast %132 : vector<1x128xf32> to vector<2x128xf32>
    %134 = arith.addf %131, %133 : vector<2x128xf32>
    %c0_64 = arith.constant 0 : index
    %c0_65 = arith.constant 0 : index
    %135 = vector.load %arg3[%c0_64, %c0_65] : memref<2x128xf32, #tpu.memory_space<vmem>>, vector<2x128xf32>
    tpu.vector_store %arg3[%c0_64, %c0_65], %134 {strides = array<i32>} : memref<2x128xf32, #tpu.memory_space<vmem>>, vector<2x128xf32>,
    return
  }
}

</mosaic_0001>

<llo_original>
// kernel: tpu_custom_call.1
$region0: #{tpu_custom_call.1}
  #allocation0 [shape = 'u32[]', space=smem, size = 0x4, offset = 0x4, fixed_abs, tag = 'smem constant byte address 0x4 - core index']
  #allocation1 [shape = 'u32[144,128]{1,0:T(1,128)}', space=vmem, size = 0x12000, scoped, tag = 'internal scratch']
  %s0 = inlined_call_operand.vmem [shape: f32[16,8], index: 0, kind: input, shape index: {}]
  %s1 = inlined_call_operand.vmem [shape: f32[16,16], index: 1, kind: input, shape index: {}]
  %s2 = inlined_call_operand.hbm [shape: f32[784,256], index: 2, kind: input, shape index: {}]
  %s3 = inlined_call_operand.hbm [shape: f32[2,128], index: 3, kind: output, shape index: {}]
  %s4 = sld [smem:[#allocation0]]
  $region26: #{tpu_custom_call.1} parent=0
    _
  %s6 = ssub.s32 1, %s4
  %s7 = scalar_select 0, %s6, %s4
  $region1: #{tpu_custom_call.1} parent=0
    #allocation2 [shape = 'u8[802816]{0}', space=vmem, size = 0xc4000, scoped, tag = 'input window, operand 2, single buffered']
    #allocation3 [shape = 's32[1]{0}', space=sflag, size = 0x4, scoped, tag = 'scoped memory for tpu_custom_call.1']
    #allocation4 [shape = 's32[1]{0}', space=sflag, size = 0x4, scoped, tag = 'scoped memory for tpu_custom_call.1']
    #allocation5 [shape = 'u8[1024]{0}', space=vmem, size = 0x400, scoped, tag = 'output window, operand 0, single buffered']
    %8 = vsyncpa [#allocation3], 0
    %9 = vsyncpa [#allocation4], 0
    // Predicated region
    $region2: #{tpu_custom_call.1} parent=1 // pred_check
      _
    $region3: #{tpu_custom_call.1} parent=1 // pred_check_branch
      %11 = sbr.rel (0) target = $region5
    $region4: #{tpu_custom_call.1} parent=1 // pred_region
      _
    $region5: #{tpu_custom_call.1} parent=1 // pred_fallthru
      _
    // Predicated region
    $region6: #{tpu_custom_call.1} parent=1 // pred_check
      _
    $region7: #{tpu_custom_call.1} parent=1 // pred_check_branch
      %13 = sbr.rel (0) target = $region9
    $region8: #{tpu_custom_call.1} parent=1 // pred_region
      _
    $region9: #{tpu_custom_call.1} parent=1 // pred_fallthru
      _
    // Predicated region
    $region10: #{tpu_custom_call.1} parent=1 // pred_check
      _
    $region11: #{tpu_custom_call.1} parent=1 // pred_check_branch
      %15 = sbr.rel (0) target = $region13
    $region12: #{tpu_custom_call.1} parent=1 // pred_region
      %s17 = ssub.s32 25088, 25088
      %18 = vsyncadd [#allocation3], %s17
      %s19 = sshll.u32 [#allocation2], 4
      %s20 = int_to_ptr.vmem [resolvable:$true] %s19
      %25 = dma.hbm_to_vmem [thread:$0]  %s2, 25088, %s20, [#allocation3], 256, 256, 16
    $region13: #{tpu_custom_call.1} parent=1 // pred_fallthru
      _
    // Predicated region
    $region14: #{tpu_custom_call.1} parent=1 // pred_check
      _
    $region15: #{tpu_custom_call.1} parent=1 // pred_check_branch
      %27 = sbr.rel (0) target = $region17
    $region16: #{tpu_custom_call.1} parent=1 // pred_region
      %28 = dma.done [#allocation3], 25088
    $region17: #{tpu_custom_call.1} parent=1 // pred_fallthru
      _
    %v29 = vld [vmem:[%s1] sm:$0xff]
    %v30 = vld [vmem:[%s1 + $0x8] sm:$0xff]
    %v31 = vld [vmem:[%s0] sm:$0xff]
    %v32 = vld [vmem:[%s0 + $0x8] sm:$0xff]
    %v33 = vld [vmem:[#allocation2] sm:$0xff]
    %v34 = vld [vmem:[#allocation2 + $0x10] ss:$0 sm:$0xff]
    %vm35 = vcmask 64512
    %v37 = vsel %vm35, %v31, 0
    %v40 = vsel %vm35, %v32, 0
    %42 = vmatprep.subr.mxu0 0.0
    %43 = vmatpush1.msra.mxu0 0.0
    %44 = vmatprep.subr.mxu0 0.0
    %45 = vmatpush1.msra.mxu0 0.0
    %46 = vmatprep.subr.mxu0 0.0
    %47 = vmatpush1.msra.mxu0 0.0
    %48 = vmatprep.subr.mxu0 0.0
    %49 = vmatpush1.msra.mxu0 0.0
    %50 = vmatprep.subr.mxu0 0.0
    %51 = vmatpush1.msra.mxu0 0.0
    %52 = vmatprep.subr.mxu0 0.0
    %53 = vmatpush1.msra.mxu0 0.0
    %54 = vmatprep.subr.mxu0 0.0
    %55 = vmatpush1.msra.mxu0 0.0
    %56 = vmatprep.subr.mxu0 0.0
    %57 = vmatpush1.msra.mxu0 0.0
    %58 = vmatprep.subr.mxu0 0.0
    %59 = vmatpush1.msra.mxu0 0.0
    %60 = vmatprep.subr.mxu0 0.0
    %61 = vmatpush1.msra.mxu0 0.0
    %62 = vmatprep.subr.mxu0 0.0
    %63 = vmatpush1.msra.mxu0 0.0
    %64 = vmatprep.subr.mxu0 0.0
    %65 = vmatpush1.msra.mxu0 0.0
    %66 = vmatprep.subr.mxu0 0.0
    %67 = vmatpush1.msra.mxu0 0.0
    %68 = vmatprep.subr.mxu0 0.0
    %69 = vmatpush1.msra.mxu0 0.0
    %70 = vmatprep.subr.mxu0 0.0
    %71 = vmatpush1.msra.mxu0 0.0
    %72 = vmatprep.subr.mxu0 0.0
    %73 = vmatpush1.msra.mxu0 %v33
    %74 = vmatprep.subr.mxu0 0.0
    %75 = vmatpush2.msra.mxu0 0.0
    %76 = vmatprep.subr.mxu0 0.0
    %77 = vmatpush2.msra.mxu0 0.0
    %78 = vmatprep.subr.mxu0 0.0
    %79 = vmatpush2.msra.mxu0 0.0
    %80 = vmatprep.subr.mxu0 0.0
    %81 = vmatpush2.msra.mxu0 0.0
    %82 = vmatprep.subr.mxu0 0.0
    %83 = vmatpush2.msra.mxu0 0.0
    %84 = vmatprep.subr.mxu0 0.0
    %85 = vmatpush2.msra.mxu0 0.0
    %86 = vmatprep.subr.mxu0 0.0
    %87 = vmatpush2.msra.mxu0 0.0
    %88 = vmatprep.subr.mxu0 0.0
    %89 = vmatpush2.msra.mxu0 0.0
    %90 = vmatprep.subr.mxu0 0.0
    %91 = vmatpush2.msra.mxu0 0.0
    %92 = vmatprep.subr.mxu0 0.0
    %93 = vmatpush2.msra.mxu0 0.0
    %94 = vmatprep.subr.mxu0 0.0
    %95 = vmatpush2.msra.mxu0 0.0
    %96 = vmatprep.subr.mxu0 0.0
    %97 = vmatpush2.msra.mxu0 0.0
    %98 = vmatprep.subr.mxu0 0.0
    %99 = vmatpush2.msra.mxu0 0.0
    %100 = vmatprep.subr.mxu0 0.0
    %101 = vmatpush2.msra.mxu0 0.0
    %102 = vmatprep.subr.mxu0 0.0
    %103 = vmatpush2.msra.mxu0 0.0
    %104 = vmatprep.subr.mxu0 0.0
    %105 = vmatpush2.msra.mxu0 0.0
    %106 = vmatprep.mubr.f32.mxu0 0.0
    %107 = vmatmul.mubr.f32.gmra.mxu0 %v37
    %v108 = vpop.f32.mrf.mxu0
    %v109 = vadd.f32 %v34, %v108
    %v110 = vpop.f32.mrf.mxu0
    %111 = vmatprep.mubr.f32.mxu0 0.0
    %112 = vmatmul.mubr.f32.gmra.mxu0 %v40
    %v113 = vpop.f32.mrf.mxu0
    %v114 = vadd.f32 %v34, %v113
    %v115 = vpop.f32.mrf.mxu0
    %116 = vdwg.mxu0
    %vm117 = vcmask 130048
    %v119 = vsel %vm117, %v29, 0
    %v122 = vsel %vm117, %v30, 0
    %124 = vmatprep.subr.mxu0 0.0
    %125 = vmatpush1.msra.mxu0 0.0
    %126 = vmatprep.subr.mxu0 0.0
    %127 = vmatpush1.msra.mxu0 0.0
    %128 = vmatprep.subr.mxu0 0.0
    %129 = vmatpush1.msra.mxu0 0.0
    %130 = vmatprep.subr.mxu0 0.0
    %131 = vmatpush1.msra.mxu0 0.0
    %132 = vmatprep.subr.mxu0 0.0
    %133 = vmatpush1.msra.mxu0 0.0
    %134 = vmatprep.subr.mxu0 0.0
    %135 = vmatpush1.msra.mxu0 0.0
    %136 = vmatprep.subr.mxu0 0.0
    %137 = vmatpush1.msra.mxu0 0.0
    %138 = vmatprep.subr.mxu0 0.0
    %139 = vmatpush1.msra.mxu0 0.0
    %140 = vmatprep.subr.mxu0 0.0
    %141 = vmatpush1.msra.mxu0 0.0
    %142 = vmatprep.subr.mxu0 0.0
    %143 = vmatpush1.msra.mxu0 0.0
    %144 = vmatprep.subr.mxu0 0.0
    %145 = vmatpush1.msra.mxu0 0.0
    %146 = vmatprep.subr.mxu0 0.0
    %147 = vmatpush1.msra.mxu0 0.0
    %148 = vmatprep.subr.mxu0 0.0
    %149 = vmatpush1.msra.mxu0 0.0
    %150 = vmatprep.subr.mxu0 0.0
    %151 = vmatpush1.msra.mxu0 0.0
    %152 = vmatprep.subr.mxu0 0.0
    %153 = vmatpush1.msra.mxu0 %v114
    %154 = vmatprep.subr.mxu0 0.0
    %155 = vmatpush1.msra.mxu0 %v109
    %156 = vmatprep.subr.mxu0 0.0
    %157 = vmatpush2.msra.mxu0 0.0
    %158 = vmatprep.subr.mxu0 0.0
    %159 = vmatpush2.msra.mxu0 0.0
    %160 = vmatprep.subr.mxu0 0.0
    %161 = vmatpush2.msra.mxu0 0.0
    %162 = vmatprep.subr.mxu0 0.0
    %163 = vmatpush2.msra.mxu0 0.0
    %164 = vmatprep.subr.mxu0 0.0
    %165 = vmatpush2.msra.mxu0 0.0
    %166 = vmatprep.subr.mxu0 0.0
    %167 = vmatpush2.msra.mxu0 0.0
    %168 = vmatprep.subr.mxu0 0.0
    %169 = vmatpush2.msra.mxu0 0.0
    %170 = vmatprep.subr.mxu0 0.0
    %171 = vmatpush2.msra.mxu0 0.0
    %172 = vmatprep.subr.mxu0 0.0
    %173 = vmatpush2.msra.mxu0 0.0
    %174 = vmatprep.subr.mxu0 0.0
    %175 = vmatpush2.msra.mxu0 0.0
    %176 = vmatprep.subr.mxu0 0.0
    %177 = vmatpush2.msra.mxu0 0.0
    %178 = vmatprep.subr.mxu0 0.0
    %179 = vmatpush2.msra.mxu0 0.0
    %180 = vmatprep.subr.mxu0 0.0
    %181 = vmatpush2.msra.mxu0 0.0
    %182 = vmatprep.subr.mxu0 0.0
    %183 = vmatpush2.msra.mxu0 0.0
    %184 = vmatprep.subr.mxu0 0.0
    %185 = vmatpush2.msra.mxu0 0.0
    %186 = vmatprep.subr.mxu0 0.0
    %187 = vmatpush2.msra.mxu0 0.0
    %188 = vmatprep.mubr.f32.mxu0 0.0
    %189 = vmatmul.mubr.f32.gmra.mxu0 %v119
    %v190 = vpop.f32.mrf.mxu0
    %v191 = vadd.f32 0.0, %v190
    %v192 = vpop.f32.mrf.mxu0
    %193 = vmatprep.mubr.f32.mxu0 0.0
    %194 = vmatmul.mubr.f32.gmra.mxu0 %v122
    %v195 = vpop.f32.mrf.mxu0
    %v196 = vadd.f32 0.0, %v195
    %v197 = vpop.f32.mrf.mxu0
    %198 = vdwg.mxu0
    %v199 = vld [vmem:[#allocation2 + $0x20] sm:$0xff]
    %v200 = vld [vmem:[#allocation2 + $0x30] sm:$0xff]
    %v201 = vld [vmem:[#allocation2 + $0x40] sm:$0xff]
    %v202 = vld [vmem:[#allocation2 + $0x50] sm:$0xff]
    %v203 = vld [vmem:[#allocation2 + $0x60] sm:$0xff]
    %v204 = vld [vmem:[#allocation2 + $0x70] sm:$0xff]
    %v205 = vld [vmem:[#allocation2 + $0x80] sm:$0xff]
    %v206 = vld [vmem:[#allocation2 + $0x90] sm:$0xff]
    %vm207 = vcmask 261120
    %v209 = vsel %vm207, %v191, 0
    %v212 = vsel %vm207, %v196, 0
    %214 = vmatprep.subr.mxu0 0.0
    %215 = vmatpush1.msra.mxu0 0.0
    %216 = vmatprep.subr.mxu0 0.0
    %217 = vmatpush1.msra.mxu0 0.0
    %218 = vmatprep.subr.mxu0 0.0
    %219 = vmatpush1.msra.mxu0 0.0
    %220 = vmatprep.subr.mxu0 0.0
    %221 = vmatpush1.msra.mxu0 0.0
    %222 = vmatprep.subr.mxu0 0.0
    %223 = vmatpush1.msra.mxu0 0.0
    %224 = vmatprep.subr.mxu0 0.0
    %225 = vmatpush1.msra.mxu0 0.0
    %226 = vmatprep.subr.mxu0 0.0
    %227 = vmatpush1.msra.mxu0 0.0
    %228 = vmatprep.subr.mxu0 0.0
    %229 = vmatpush1.msra.mxu0 0.0
    %230 = vmatprep.subr.mxu0 0.0
    %231 = vmatpush1.msra.mxu0 0.0
    %232 = vmatprep.subr.mxu0 0.0
    %233 = vmatpush1.msra.mxu0 0.0
    %234 = vmatprep.subr.mxu0 0.0
    %235 = vmatpush1.msra.mxu0 0.0
    %236 = vmatprep.subr.mxu0 0.0
    %237 = vmatpush1.msra.mxu0 0.0
    %238 = vmatprep.subr.mxu0 0.0
    %239 = vmatpush1.msra.mxu0 %v206
    %240 = vmatprep.subr.mxu0 0.0
    %241 = vmatpush1.msra.mxu0 %v205
    %242 = vmatprep.subr.mxu0 0.0
    %243 = vmatpush1.msra.mxu0 %v204
    %244 = vmatprep.subr.mxu0 0.0
    %245 = vmatpush1.msra.mxu0 %v203
    %246 = vmatprep.subr.mxu0 0.0
    %247 = vmatpush2.msra.mxu0 0.0
    %248 = vmatprep.subr.mxu0 0.0
    %249 = vmatpush2.msra.mxu0 0.0
    %250 = vmatprep.subr.mxu0 0.0
    %251 = vmatpush2.msra.mxu0 0.0
    %252 = vmatprep.subr.mxu0 0.0
    %253 = vmatpush2.msra.mxu0 0.0
    %254 = vmatprep.subr.mxu0 0.0
    %255 = vmatpush2.msra.mxu0 0.0
    %256 = vmatprep.subr.mxu0 0.0
    %257 = vmatpush2.msra.mxu0 0.0
    %258 = vmatprep.subr.mxu0 0.0
    %259 = vmatpush2.msra.mxu0 0.0
    %260 = vmatprep.subr.mxu0 0.0
    %261 = vmatpush2.msra.mxu0 0.0
    %262 = vmatprep.subr.mxu0 0.0
    %263 = vmatpush2.msra.mxu0 0.0
    %264 = vmatprep.subr.mxu0 0.0
    %265 = vmatpush2.msra.mxu0 0.0
    %266 = vmatprep.subr.mxu0 0.0
    %267 = vmatpush2.msra.mxu0 0.0
    %268 = vmatprep.subr.mxu0 0.0
    %269 = vmatpush2.msra.mxu0 0.0
    %270 = vmatprep.subr.mxu0 0.0
    %271 = vmatpush2.msra.mxu0 0.0
    %272 = vmatprep.subr.mxu0 0.0
    %273 = vmatpush2.msra.mxu0 0.0
    %274 = vmatprep.subr.mxu0 0.0
    %275 = vmatpush2.msra.mxu0 0.0
    %276 = vmatprep.subr.mxu0 0.0
    %277 = vmatpush2.msra.mxu0 0.0
    %278 = vmatprep.mubr.f32.mxu0 0.0
    %279 = vmatmul.mubr.f32.gmra.mxu0 %v209
    %v280 = vpop.f32.mrf.mxu0
    %v281 = vadd.f32 0.0, %v280
    %v282 = vpop.f32.mrf.mxu0
    %283 = vmatprep.mubr.f32.mxu0 0.0
    %284 = vmatmul.mubr.f32.gmra.mxu0 %v212
    %v285 = vpop.f32.mrf.mxu0
    %v286 = vadd.f32 0.0, %v285
    %v287 = vpop.f32.mrf.mxu0
    %288 = vdwg.mxu0
    %v290 = vsel %vm207, %v109, 0
    %v293 = vsel %vm207, %v114, 0
    %295 = vmatprep.subr.mxu0 0.0
    %296 = vmatpush1.msra.mxu0 0.0
    %297 = vmatprep.subr.mxu0 0.0
    %298 = vmatpush1.msra.mxu0 0.0
    %299 = vmatprep.subr.mxu0 0.0
    %300 = vmatpush1.msra.mxu0 0.0
    %301 = vmatprep.subr.mxu0 0.0
    %302 = vmatpush1.msra.mxu0 0.0
    %303 = vmatprep.subr.mxu0 0.0
    %304 = vmatpush1.msra.mxu0 0.0
    %305 = vmatprep.subr.mxu0 0.0
    %306 = vmatpush1.msra.mxu0 0.0
    %307 = vmatprep.subr.mxu0 0.0
    %308 = vmatpush1.msra.mxu0 0.0
    %309 = vmatprep.subr.mxu0 0.0
    %310 = vmatpush1.msra.mxu0 0.0
    %311 = vmatprep.subr.mxu0 0.0
    %312 = vmatpush1.msra.mxu0 0.0
    %313 = vmatprep.subr.mxu0 0.0
    %314 = vmatpush1.msra.mxu0 0.0
    %315 = vmatprep.subr.mxu0 0.0
    %316 = vmatpush1.msra.mxu0 0.0
    %317 = vmatprep.subr.mxu0 0.0
    %318 = vmatpush1.msra.mxu0 0.0
    %319 = vmatprep.subr.mxu0 0.0
    %320 = vmatpush1.msra.mxu0 %v202
    %321 = vmatprep.subr.mxu0 0.0
    %322 = vmatpush1.msra.mxu0 %v201
    %323 = vmatprep.subr.mxu0 0.0
    %324 = vmatpush1.msra.mxu0 %v200
    %325 = vmatprep.subr.mxu0 0.0
    %326 = vmatpush1.msra.mxu0 %v199
    %327 = vmatprep.subr.mxu0 0.0
    %328 = vmatpush2.msra.mxu0 0.0
    %329 = vmatprep.subr.mxu0 0.0
    %330 = vmatpush2.msra.mxu0 0.0
    %331 = vmatprep.subr.mxu0 0.0
    %332 = vmatpush2.msra.mxu0 0.0
    %333 = vmatprep.subr.mxu0 0.0
    %334 = vmatpush2.msra.mxu0 0.0
    %335 = vmatprep.subr.mxu0 0.0
    %336 = vmatpush2.msra.mxu0 0.0
    %337 = vmatprep.subr.mxu0 0.0
    %338 = vmatpush2.msra.mxu0 0.0
    %339 = vmatprep.subr.mxu0 0.0
    %340 = vmatpush2.msra.mxu0 0.0
    %341 = vmatprep.subr.mxu0 0.0
    %342 = vmatpush2.msra.mxu0 0.0
    %343 = vmatprep.subr.mxu0 0.0
    %344 = vmatpush2.msra.mxu0 0.0
    %345 = vmatprep.subr.mxu0 0.0
    %346 = vmatpush2.msra.mxu0 0.0
    %347 = vmatprep.subr.mxu0 0.0
    %348 = vmatpush2.msra.mxu0 0.0
    %349 = vmatprep.subr.mxu0 0.0
    %350 = vmatpush2.msra.mxu0 0.0
    %351 = vmatprep.subr.mxu0 0.0
    %352 = vmatpush2.msra.mxu0 0.0
    %353 = vmatprep.subr.mxu0 0.0
    %354 = vmatpush2.msra.mxu0 0.0
    %355 = vmatprep.subr.mxu0 0.0
    %356 = vmatpush2.msra.mxu0 0.0
    %357 = vmatprep.subr.mxu0 0.0
    %358 = vmatpush2.msra.mxu0 0.0
    %359 = vmatprep.mubr.f32.mxu0 0.0
    %360 = vmatmul.mubr.f32.gmra.mxu0 %v290
    %v361 = vpop.f32.mrf.mxu0
    %v362 = vadd.f32 %v281, %v361
    %v363 = vpop.f32.mrf.mxu0
    %364 = vmatprep.mubr.f32.mxu0 0.0
    %365 = vmatmul.mubr.f32.gmra.mxu0 %v293
    %v366 = vpop.f32.mrf.mxu0
    %v367 = vadd.f32 %v286, %v366
    %v368 = vpop.f32.mrf.mxu0
    %369 = vdwg.mxu0
    %v370 = vld [vmem:[#allocation2 + $0xa0] ss:$0 sm:$0xff]
    %v371 = vadd.f32 %v362, %v370
    %v372 = vadd.f32 %v367, %v370
    %vm373 = vcmp.ge.f32.partialorder %v371, 0.0
    %vm374 = vcmp.ge.f32.partialorder %v372, 0.0
    %v375 = vmul.f32 %v371, 0.01
    %v376 = vmul.f32 %v372, 0.01
    %v377 = vsel %vm373, %v371, %v375
    %v378 = vsel %vm374, %v372, %v376
    %v379 = vld [vmem:[#allocation2 + $0x1d0] sm:$0xff]
    %v380 = vld [vmem:[#allocation2 + $0x1d8] sm:$0xff]
    %v381 = vld [vmem:[#allocation2 + $0x1e0] sm:$0xff]
    %v382 = vld [vmem:[#allocation2 + $0x1e8] sm:$0xff]
    %v383 = vld [vmem:[#allocation2 + $0x1f0] sm:$0xff]
    %v384 = vld [vmem:[#allocation2 + $0x1f8] sm:$0xff]
    %v385 = vld [vmem:[#allocation2 + $0x200] sm:$0xff]
    %v386 = vld [vmem:[#allocation2 + $0x208] sm:$0xff]
    %387 = vmatprep.subr.mxu0 0.0
    %388 = vmatpush1.msra.mxu0 0.0
    %389 = vmatprep.subr.mxu0 0.0
    %390 = vmatpush1.msra.mxu0 0.0
    %391 = vmatprep.subr.mxu0 0.0
    %392 = vmatpush1.msra.mxu0 0.0
    %393 = vmatprep.subr.mxu0 0.0
    %394 = vmatpush1.msra.mxu0 0.0
    %395 = vmatprep.subr.mxu0 0.0
    %396 = vmatpush1.msra.mxu0 0.0
    %397 = vmatprep.subr.mxu0 0.0
    %398 = vmatpush1.msra.mxu0 0.0
    %399 = vmatprep.subr.mxu0 0.0
    %400 = vmatpush1.msra.mxu0 0.0
    %401 = vmatprep.subr.mxu0 0.0
    %402 = vmatpush1.msra.mxu0 0.0
    %403 = vmatprep.subr.mxu0 0.0
    %404 = vmatpush1.msra.mxu0 0.0
    %405 = vmatprep.subr.mxu0 0.0
    %406 = vmatpush1.msra.mxu0 0.0
    %407 = vmatprep.subr.mxu0 0.0
    %408 = vmatpush1.msra.mxu0 0.0
    %409 = vmatprep.subr.mxu0 0.0
    %410 = vmatpush1.msra.mxu0 0.0
    %411 = vmatprep.subr.mxu0 0.0
    %412 = vmatpush1.msra.mxu0 0.0
    %413 = vmatprep.subr.mxu0 0.0
    %414 = vmatpush1.msra.mxu0 0.0
    %415 = vmatprep.subr.mxu0 0.0
    %416 = vmatpush1.msra.mxu0 %v378
    %417 = vmatprep.subr.mxu0 0.0
    %418 = vmatpush1.msra.mxu0 %v377
    %419 = vmatprep.subr.mxu0 0.0
    %420 = vmatpush2.msra.mxu0 0.0
    %421 = vmatprep.subr.mxu0 0.0
    %422 = vmatpush2.msra.mxu0 0.0
    %423 = vmatprep.subr.mxu0 0.0
    %424 = vmatpush2.msra.mxu0 0.0
    %425 = vmatprep.subr.mxu0 0.0
    %426 = vmatpush2.msra.mxu0 0.0
    %427 = vmatprep.subr.mxu0 0.0
    %428 = vmatpush2.msra.mxu0 0.0
    %429 = vmatprep.subr.mxu0 0.0
    %430 = vmatpush2.msra.mxu0 0.0
    %431 = vmatprep.subr.mxu0 0.0
    %432 = vmatpush2.msra.mxu0 0.0
    %433 = vmatprep.subr.mxu0 0.0
    %434 = vmatpush2.msra.mxu0 0.0
    %435 = vmatprep.subr.mxu0 0.0
    %436 = vmatpush2.msra.mxu0 0.0
    %437 = vmatprep.subr.mxu0 0.0
    %438 = vmatpush2.msra.mxu0 0.0
    %439 = vmatprep.subr.mxu0 0.0
    %440 = vmatpush2.msra.mxu0 0.0
    %441 = vmatprep.subr.mxu0 0.0
    %442 = vmatpush2.msra.mxu0 0.0
    %443 = vmatprep.subr.mxu0 0.0
    %444 = vmatpush2.msra.mxu0 0.0
    %445 = vmatprep.subr.mxu0 0.0
    %446 = vmatpush2.msra.mxu0 0.0
    %447 = vmatprep.subr.mxu0 0.0
    %448 = vmatpush2.msra.mxu0 0.0
    %449 = vmatprep.subr.mxu0 0.0
    %450 = vmatpush2.msra.mxu0 0.0
    %451 = vmatprep.mubr.f32.mxu0 0.0
    %452 = vmatmul.mubr.f32.gmra.mxu0 %v119
    %v453 = vpop.f32.mrf.mxu0
    %v454 = vadd.f32 0.0, %v453
    %v455 = vpop.f32.mrf.mxu0
    %456 = vmatprep.mubr.f32.mxu0 0.0
    %457 = vmatmul.mubr.f32.gmra.mxu0 %v122
    %v458 = vpop.f32.mrf.mxu0
    %v459 = vadd.f32 0.0, %v458
    %v460 = vpop.f32.mrf.mxu0
    %461 = vdwg.mxu0
    %v462 = vld [vmem:[#allocation2 + $0xb0] sm:$0xff]
    %v463 = vld [vmem:[#allocation2 + $0xc0] sm:$0xff]
    %v464 = vld [vmem:[#allocation2 + $0xd0] sm:$0xff]
    %v465 = vld [vmem:[#allocation2 + $0xe0] sm:$0xff]
    %v466 = vld [vmem:[#allocation2 + $0xf0] sm:$0xff]
    %v467 = vld [vmem:[#allocation2 + $0x100] sm:$0xff]
    %v468 = vld [vmem:[#allocation2 + $0x110] sm:$0xff]
    %v469 = vld [vmem:[#allocation2 + $0x120] sm:$0xff]
    %v471 = vsel %vm207, %v454, 0
    %v474 = vsel %vm207, %v459, 0
    %476 = vmatprep.subr.mxu0 0.0
    %477 = vmatpush1.msra.mxu0 0.0
    %478 = vmatprep.subr.mxu0 0.0
    %479 = vmatpush1.msra.mxu0 0.0
    %480 = vmatprep.subr.mxu0 0.0
    %481 = vmatpush1.msra.mxu0 0.0
    %482 = vmatprep.subr.mxu0 0.0
    %483 = vmatpush1.msra.mxu0 0.0
    %484 = vmatprep.subr.mxu0 0.0
    %485 = vmatpush1.msra.mxu0 0.0
    %486 = vmatprep.subr.mxu0 0.0
    %487 = vmatpush1.msra.mxu0 0.0
    %488 = vmatprep.subr.mxu0 0.0
    %489 = vmatpush1.msra.mxu0 0.0
    %490 = vmatprep.subr.mxu0 0.0
    %491 = vmatpush1.msra.mxu0 0.0
    %492 = vmatprep.subr.mxu0 0.0
    %493 = vmatpush1.msra.mxu0 0.0
    %494 = vmatprep.subr.mxu0 0.0
    %495 = vmatpush1.msra.mxu0 0.0
    %496 = vmatprep.subr.mxu0 0.0
    %497 = vmatpush1.msra.mxu0 0.0
    %498 = vmatprep.subr.mxu0 0.0
    %499 = vmatpush1.msra.mxu0 0.0
    %500 = vmatprep.subr.mxu0 0.0
    %501 = vmatpush1.msra.mxu0 %v469
    %502 = vmatprep.subr.mxu0 0.0
    %503 = vmatpush1.msra.mxu0 %v468
    %504 = vmatprep.subr.mxu0 0.0
    %505 = vmatpush1.msra.mxu0 %v467
    %506 = vmatprep.subr.mxu0 0.0
    %507 = vmatpush1.msra.mxu0 %v466
    %508 = vmatprep.subr.mxu0 0.0
    %509 = vmatpush2.msra.mxu0 0.0
    %510 = vmatprep.subr.mxu0 0.0
    %511 = vmatpush2.msra.mxu0 0.0
    %512 = vmatprep.subr.mxu0 0.0
    %513 = vmatpush2.msra.mxu0 0.0
    %514 = vmatprep.subr.mxu0 0.0
    %515 = vmatpush2.msra.mxu0 0.0
    %516 = vmatprep.subr.mxu0 0.0
    %517 = vmatpush2.msra.mxu0 0.0
    %518 = vmatprep.subr.mxu0 0.0
    %519 = vmatpush2.msra.mxu0 0.0
    %520 = vmatprep.subr.mxu0 0.0
    %521 = vmatpush2.msra.mxu0 0.0
    %522 = vmatprep.subr.mxu0 0.0
    %523 = vmatpush2.msra.mxu0 0.0
    %524 = vmatprep.subr.mxu0 0.0
    %525 = vmatpush2.msra.mxu0 0.0
    %526 = vmatprep.subr.mxu0 0.0
    %527 = vmatpush2.msra.mxu0 0.0
    %528 = vmatprep.subr.mxu0 0.0
    %529 = vmatpush2.msra.mxu0 0.0
    %530 = vmatprep.subr.mxu0 0.0
    %531 = vmatpush2.msra.mxu0 0.0
    %532 = vmatprep.subr.mxu0 0.0
    %533 = vmatpush2.msra.mxu0 0.0
    %534 = vmatprep.subr.mxu0 0.0
    %535 = vmatpush2.msra.mxu0 0.0
    %536 = vmatprep.subr.mxu0 0.0
    %537 = vmatpush2.msra.mxu0 0.0
    %538 = vmatprep.subr.mxu0 0.0
    %539 = vmatpush2.msra.mxu0 0.0
    %540 = vmatprep.mubr.f32.mxu0 0.0
    %541 = vmatmul.mubr.f32.gmra.mxu0 %v471
    %v542 = vpop.f32.mrf.mxu0
    %v543 = vadd.f32 0.0, %v542
    %v544 = vpop.f32.mrf.mxu0
    %545 = vmatprep.mubr.f32.mxu0 0.0
    %546 = vmatmul.mubr.f32.gmra.mxu0 %v474
    %v547 = vpop.f32.mrf.mxu0
    %v548 = vadd.f32 0.0, %v547
    %v549 = vpop.f32.mrf.mxu0
    %550 = vdwg.mxu0
    %v552 = vsel %vm207, %v377, 0
    %v555 = vsel %vm207, %v378, 0
    %557 = vmatprep.subr.mxu0 0.0
    %558 = vmatpush1.msra.mxu0 0.0
    %559 = vmatprep.subr.mxu0 0.0
    %560 = vmatpush1.msra.mxu0 0.0
    %561 = vmatprep.subr.mxu0 0.0
    %562 = vmatpush1.msra.mxu0 0.0
    %563 = vmatprep.subr.mxu0 0.0
    %564 = vmatpush1.msra.mxu0 0.0
    %565 = vmatprep.subr.mxu0 0.0
    %566 = vmatpush1.msra.mxu0 0.0
    %567 = vmatprep.subr.mxu0 0.0
    %568 = vmatpush1.msra.mxu0 0.0
    %569 = vmatprep.subr.mxu0 0.0
    %570 = vmatpush1.msra.mxu0 0.0
    %571 = vmatprep.subr.mxu0 0.0
    %572 = vmatpush1.msra.mxu0 0.0
    %573 = vmatprep.subr.mxu0 0.0
    %574 = vmatpush1.msra.mxu0 0.0
    %575 = vmatprep.subr.mxu0 0.0
    %576 = vmatpush1.msra.mxu0 0.0
    %577 = vmatprep.subr.mxu0 0.0
    %578 = vmatpush1.msra.mxu0 0.0
    %579 = vmatprep.subr.mxu0 0.0
    %580 = vmatpush1.msra.mxu0 0.0
    %581 = vmatprep.subr.mxu0 0.0
    %582 = vmatpush1.msra.mxu0 %v465
    %583 = vmatprep.subr.mxu0 0.0
    %584 = vmatpush1.msra.mxu0 %v464
    %585 = vmatprep.subr.mxu0 0.0
    %586 = vmatpush1.msra.mxu0 %v463
    %587 = vmatprep.subr.mxu0 0.0
    %588 = vmatpush1.msra.mxu0 %v462
    %589 = vmatprep.subr.mxu0 0.0
    %590 = vmatpush2.msra.mxu0 0.0
    %591 = vmatprep.subr.mxu0 0.0
    %592 = vmatpush2.msra.mxu0 0.0
    %593 = vmatprep.subr.mxu0 0.0
    %594 = vmatpush2.msra.mxu0 0.0
    %595 = vmatprep.subr.mxu0 0.0
    %596 = vmatpush2.msra.mxu0 0.0
    %597 = vmatprep.subr.mxu0 0.0
    %598 = vmatpush2.msra.mxu0 0.0
    %599 = vmatprep.subr.mxu0 0.0
    %600 = vmatpush2.msra.mxu0 0.0
    %601 = vmatprep.subr.mxu0 0.0
    %602 = vmatpush2.msra.mxu0 0.0
    %603 = vmatprep.subr.mxu0 0.0
    %604 = vmatpush2.msra.mxu0 0.0
    %605 = vmatprep.subr.mxu0 0.0
    %606 = vmatpush2.msra.mxu0 0.0
    %607 = vmatprep.subr.mxu0 0.0
    %608 = vmatpush2.msra.mxu0 0.0
    %609 = vmatprep.subr.mxu0 0.0
    %610 = vmatpush2.msra.mxu0 0.0
    %611 = vmatprep.subr.mxu0 0.0
    %612 = vmatpush2.msra.mxu0 0.0
    %613 = vmatprep.subr.mxu0 0.0
    %614 = vmatpush2.msra.mxu0 0.0
    %615 = vmatprep.subr.mxu0 0.0
    %616 = vmatpush2.msra.mxu0 0.0
    %617 = vmatprep.subr.mxu0 0.0
    %618 = vmatpush2.msra.mxu0 0.0
    %619 = vmatprep.subr.mxu0 0.0
    %620 = vmatpush2.msra.mxu0 0.0
    %621 = vmatprep.mubr.f32.mxu0 0.0
    %622 = vmatmul.mubr.f32.gmra.mxu0 %v552
    %v623 = vpop.f32.mrf.mxu0
    %v624 = vadd.f32 %v543, %v623
    %v625 = vpop.f32.mrf.mxu0
    %626 = vmatprep.mubr.f32.mxu0 0.0
    %627 = vmatmul.mubr.f32.gmra.mxu0 %v555
    %v628 = vpop.f32.mrf.mxu0
    %v629 = vadd.f32 %v548, %v628
    %v630 = vpop.f32.mrf.mxu0
    %631 = vdwg.mxu0
    %v632 = vld [vmem:[#allocation2 + $0x130] ss:$0 sm:$0xff]
    %v633 = vadd.f32 %v624, %v632
    %v634 = vadd.f32 %v629, %v632
    %vm635 = vcmp.ge.f32.partialorder %v633, 0.0
    %vm636 = vcmp.ge.f32.partialorder %v634, 0.0
    %v637 = vmul.f32 %v633, 0.01
    %v638 = vmul.f32 %v634, 0.01
    %v639 = vsel %vm635, %v633, %v637
    %v640 = vsel %vm636, %v634, %v638
    %v641 = vld [vmem:[#allocation2 + $0x210] sm:$0xff]
    %v642 = vld [vmem:[#allocation2 + $0x218] sm:$0xff]
    %v643 = vld [vmem:[#allocation2 + $0x220] sm:$0xff]
    %v644 = vld [vmem:[#allocation2 + $0x228] sm:$0xff]
    %v645 = vld [vmem:[#allocation2 + $0x230] sm:$0xff]
    %v646 = vld [vmem:[#allocation2 + $0x238] sm:$0xff]
    %v647 = vld [vmem:[#allocation2 + $0x240] sm:$0xff]
    %v648 = vld [vmem:[#allocation2 + $0x248] sm:$0xff]
    %v650 = vsel %vm207, %v639, 0
    %v653 = vsel %vm207, %v640, 0
    %655 = vmatprep.subr.mxu0 0.0
    %656 = vmatpush1.msra.mxu0 0.0
    %657 = vmatprep.subr.mxu0 0.0
    %658 = vmatpush1.msra.mxu0 0.0
    %659 = vmatprep.subr.mxu0 0.0
    %660 = vmatpush1.msra.mxu0 0.0
    %661 = vmatprep.subr.mxu0 0.0
    %662 = vmatpush1.msra.mxu0 0.0
    %663 = vmatprep.subr.mxu0 0.0
    %664 = vmatpush1.msra.mxu0 0.0
    %665 = vmatprep.subr.mxu0 0.0
    %666 = vmatpush1.msra.mxu0 0.0
    %667 = vmatprep.subr.mxu0 0.0
    %668 = vmatpush1.msra.mxu0 0.0
    %669 = vmatprep.subr.mxu0 0.0
    %670 = vmatpush1.msra.mxu0 0.0
    %671 = vmatprep.subr.mxu0 0.0
    %672 = vmatpush1.msra.mxu0 0.0
    %673 = vmatprep.subr.mxu0 0.0
    %674 = vmatpush1.msra.mxu0 0.0
    %675 = vmatprep.subr.mxu0 0.0
    %676 = vmatpush1.msra.mxu0 0.0
    %677 = vmatprep.subr.mxu0 0.0
    %678 = vmatpush1.msra.mxu0 0.0
    %679 = vmatprep.subr.mxu0 %v648
    %680 = vmatpush1.msra.mxu0 %v647
    %681 = vmatprep.subr.mxu0 %v646
    %682 = vmatpush1.msra.mxu0 %v645
    %683 = vmatprep.subr.mxu0 %v644
    %684 = vmatpush1.msra.mxu0 %v643
    %685 = vmatprep.subr.mxu0 %v642
    %686 = vmatpush1.msra.mxu0 %v641
    %687 = vmatprep.subr.mxu0 0.0
    %688 = vmatpush2.msra.mxu0 0.0
    %689 = vmatprep.subr.mxu0 0.0
    %690 = vmatpush2.msra.mxu0 0.0
    %691 = vmatprep.subr.mxu0 0.0
    %692 = vmatpush2.msra.mxu0 0.0
    %693 = vmatprep.subr.mxu0 0.0
    %694 = vmatpush2.msra.mxu0 0.0
    %695 = vmatprep.subr.mxu0 0.0
    %696 = vmatpush2.msra.mxu0 0.0
    %697 = vmatprep.subr.mxu0 0.0
    %698 = vmatpush2.msra.mxu0 0.0
    %699 = vmatprep.subr.mxu0 0.0
    %700 = vmatpush2.msra.mxu0 0.0
    %701 = vmatprep.subr.mxu0 0.0
    %702 = vmatpush2.msra.mxu0 0.0
    %703 = vmatprep.subr.mxu0 0.0
    %704 = vmatpush2.msra.mxu0 0.0
    %705 = vmatprep.subr.mxu0 0.0
    %706 = vmatpush2.msra.mxu0 0.0
    %707 = vmatprep.subr.mxu0 0.0
    %708 = vmatpush2.msra.mxu0 0.0
    %709 = vmatprep.subr.mxu0 0.0
    %710 = vmatpush2.msra.mxu0 0.0
    %711 = vmatprep.subr.mxu0 0.0
    %712 = vmatpush2.msra.mxu0 0.0
    %713 = vmatprep.subr.mxu0 0.0
    %714 = vmatpush2.msra.mxu0 0.0
    %715 = vmatprep.subr.mxu0 0.0
    %716 = vmatpush2.msra.mxu0 0.0
    %717 = vmatprep.subr.mxu0 0.0
    %718 = vmatpush2.msra.mxu0 0.0
    %719 = vmatprep.mubr.f32.mxu0 0.0
    %720 = vmatmul.mubr.f32.gmra.mxu0 %v650
    %v721 = vpop.f32.mrf.mxu0
    %v722 = vadd.f32 0.0, %v721
    %v723 = vpop.f32.mrf.mxu0
    %v724 = vadd.f32 0.0, %v723
    %725 = vmatprep.mubr.f32.mxu0 0.0
    %726 = vmatmul.mubr.f32.gmra.mxu0 %v653
    %v727 = vpop.f32.mrf.mxu0
    %v728 = vadd.f32 0.0, %v727
    %v729 = vpop.f32.mrf.mxu0
    %v730 = vadd.f32 0.0, %v729
    %731 = vdwg.mxu0
    %732 = vmatprep.subr.mxu0 0.0
    %733 = vmatpush1.msra.mxu0 0.0
    %734 = vmatprep.subr.mxu0 0.0
    %735 = vmatpush1.msra.mxu0 0.0
    %736 = vmatprep.subr.mxu0 0.0
    %737 = vmatpush1.msra.mxu0 0.0
    %738 = vmatprep.subr.mxu0 0.0
    %739 = vmatpush1.msra.mxu0 0.0
    %740 = vmatprep.subr.mxu0 0.0
    %741 = vmatpush1.msra.mxu0 0.0
    %742 = vmatprep.subr.mxu0 0.0
    %743 = vmatpush1.msra.mxu0 0.0
    %744 = vmatprep.subr.mxu0 0.0
    %745 = vmatpush1.msra.mxu0 0.0
    %746 = vmatprep.subr.mxu0 0.0
    %747 = vmatpush1.msra.mxu0 0.0
    %748 = vmatprep.subr.mxu0 0.0
    %749 = vmatpush1.msra.mxu0 0.0
    %750 = vmatprep.subr.mxu0 0.0
    %751 = vmatpush1.msra.mxu0 0.0
    %752 = vmatprep.subr.mxu0 0.0
    %753 = vmatpush1.msra.mxu0 0.0
    %754 = vmatprep.subr.mxu0 0.0
    %755 = vmatpush1.msra.mxu0 0.0
    %756 = vmatprep.subr.mxu0 %v386
    %757 = vmatpush1.msra.mxu0 %v385
    %758 = vmatprep.subr.mxu0 %v384
    %759 = vmatpush1.msra.mxu0 %v383
    %760 = vmatprep.subr.mxu0 %v382
    %761 = vmatpush1.msra.mxu0 %v381
    %762 = vmatprep.subr.mxu0 %v380
    %763 = vmatpush1.msra.mxu0 %v379
    %764 = vmatprep.subr.mxu0 0.0
    %765 = vmatpush2.msra.mxu0 0.0
    %766 = vmatprep.subr.mxu0 0.0
    %767 = vmatpush2.msra.mxu0 0.0
    %768 = vmatprep.subr.mxu0 0.0
    %769 = vmatpush2.msra.mxu0 0.0
    %770 = vmatprep.subr.mxu0 0.0
    %771 = vmatpush2.msra.mxu0 0.0
    %772 = vmatprep.subr.mxu0 0.0
    %773 = vmatpush2.msra.mxu0 0.0
    %774 = vmatprep.subr.mxu0 0.0
    %775 = vmatpush2.msra.mxu0 0.0
    %776 = vmatprep.subr.mxu0 0.0
    %777 = vmatpush2.msra.mxu0 0.0
    %778 = vmatprep.subr.mxu0 0.0
    %779 = vmatpush2.msra.mxu0 0.0
    %780 = vmatprep.subr.mxu0 0.0
    %781 = vmatpush2.msra.mxu0 0.0
    %782 = vmatprep.subr.mxu0 0.0
    %783 = vmatpush2.msra.mxu0 0.0
    %784 = vmatprep.subr.mxu0 0.0
    %785 = vmatpush2.msra.mxu0 0.0
    %786 = vmatprep.subr.mxu0 0.0
    %787 = vmatpush2.msra.mxu0 0.0
    %788 = vmatprep.subr.mxu0 0.0
    %789 = vmatpush2.msra.mxu0 0.0
    %790 = vmatprep.subr.mxu0 0.0
    %791 = vmatpush2.msra.mxu0 0.0
    %792 = vmatprep.subr.mxu0 0.0
    %793 = vmatpush2.msra.mxu0 0.0
    %794 = vmatprep.subr.mxu0 0.0
    %795 = vmatpush2.msra.mxu0 0.0
    %796 = vmatprep.mubr.f32.mxu0 0.0
    %797 = vmatmul.mubr.f32.gmra.mxu0 %v552
    %v798 = vpop.f32.mrf.mxu0
    %v799 = vadd.f32 %v722, %v798
    %v800 = vpop.f32.mrf.mxu0
    %v801 = vadd.f32 %v724, %v800
    %802 = vmatprep.mubr.f32.mxu0 0.0
    %803 = vmatmul.mubr.f32.gmra.mxu0 %v555
    %v804 = vpop.f32.mrf.mxu0
    %v805 = vadd.f32 %v728, %v804
    %v806 = vpop.f32.mrf.mxu0
    %v807 = vadd.f32 %v730, %v806
    %808 = vdwg.mxu0
    %809 = vmatprep.subr.mxu0 0.0
    %810 = vmatpush1.msra.mxu0 0.0
    %811 = vmatprep.subr.mxu0 0.0
    %812 = vmatpush1.msra.mxu0 0.0
    %813 = vmatprep.subr.mxu0 0.0
    %814 = vmatpush1.msra.mxu0 0.0
    %815 = vmatprep.subr.mxu0 0.0
    %816 = vmatpush1.msra.mxu0 0.0
    %817 = vmatprep.subr.mxu0 0.0
    %818 = vmatpush1.msra.mxu0 0.0
    %819 = vmatprep.subr.mxu0 0.0
    %820 = vmatpush1.msra.mxu0 0.0
    %821 = vmatprep.subr.mxu0 0.0
    %822 = vmatpush1.msra.mxu0 0.0
    %823 = vmatprep.subr.mxu0 0.0
    %824 = vmatpush1.msra.mxu0 0.0
    %825 = vmatprep.subr.mxu0 0.0
    %826 = vmatpush1.msra.mxu0 0.0
    %827 = vmatprep.subr.mxu0 0.0
    %828 = vmatpush1.msra.mxu0 0.0
    %829 = vmatprep.subr.mxu0 0.0
    %830 = vmatpush1.msra.mxu0 0.0
    %831 = vmatprep.subr.mxu0 0.0
    %832 = vmatpush1.msra.mxu0 0.0
    %833 = vmatprep.subr.mxu0 0.0
    %834 = vmatpush1.msra.mxu0 0.0
    %835 = vmatprep.subr.mxu0 0.0
    %836 = vmatpush1.msra.mxu0 0.0
    %837 = vmatprep.subr.mxu0 0.0
    %838 = vmatpush1.msra.mxu0 %v640
    %839 = vmatprep.subr.mxu0 0.0
    %840 = vmatpush1.msra.mxu0 %v639
    %841 = vmatprep.subr.mxu0 0.0
    %842 = vmatpush2.msra.mxu0 0.0
    %843 = vmatprep.subr.mxu0 0.0
    %844 = vmatpush2.msra.mxu0 0.0
    %845 = vmatprep.subr.mxu0 0.0
    %846 = vmatpush2.msra.mxu0 0.0
    %847 = vmatprep.subr.mxu0 0.0
    %848 = vmatpush2.msra.mxu0 0.0
    %849 = vmatprep.subr.mxu0 0.0
    %850 = vmatpush2.msra.mxu0 0.0
    %851 = vmatprep.subr.mxu0 0.0
    %852 = vmatpush2.msra.mxu0 0.0
    %853 = vmatprep.subr.mxu0 0.0
    %854 = vmatpush2.msra.mxu0 0.0
    %855 = vmatprep.subr.mxu0 0.0
    %856 = vmatpush2.msra.mxu0 0.0
    %857 = vmatprep.subr.mxu0 0.0
    %858 = vmatpush2.msra.mxu0 0.0
    %859 = vmatprep.subr.mxu0 0.0
    %860 = vmatpush2.msra.mxu0 0.0
    %861 = vmatprep.subr.mxu0 0.0
    %862 = vmatpush2.msra.mxu0 0.0
    %863 = vmatprep.subr.mxu0 0.0
    %864 = vmatpush2.msra.mxu0 0.0
    %865 = vmatprep.subr.mxu0 0.0
    %866 = vmatpush2.msra.mxu0 0.0
    %867 = vmatprep.subr.mxu0 0.0
    %868 = vmatpush2.msra.mxu0 0.0
    %869 = vmatprep.subr.mxu0 0.0
    %870 = vmatpush2.msra.mxu0 0.0
    %871 = vmatprep.subr.mxu0 0.0
    %872 = vmatpush2.msra.mxu0 0.0
    %873 = vmatprep.mubr.f32.mxu0 0.0
    %874 = vmatmul.mubr.f32.gmra.mxu0 %v119
    %v875 = vpop.f32.mrf.mxu0
    %v876 = vadd.f32 0.0, %v875
    %v877 = vpop.f32.mrf.mxu0
    %878 = vmatprep.mubr.f32.mxu0 0.0
    %879 = vmatmul.mubr.f32.gmra.mxu0 %v122
    %v880 = vpop.f32.mrf.mxu0
    %v881 = vadd.f32 0.0, %v880
    %v882 = vpop.f32.mrf.mxu0
    %883 = vdwg.mxu0
    %v884 = vld [vmem:[#allocation2 + $0x140] sm:$0xff]
    %v885 = vld [vmem:[#allocation2 + $0x150] sm:$0xff]
    %v886 = vld [vmem:[#allocation2 + $0x160] sm:$0xff]
    %v887 = vld [vmem:[#allocation2 + $0x170] sm:$0xff]
    %v888 = vld [vmem:[#allocation2 + $0x180] sm:$0xff]
    %v889 = vld [vmem:[#allocation2 + $0x190] sm:$0xff]
    %v890 = vld [vmem:[#allocation2 + $0x1a0] sm:$0xff]
    %v891 = vld [vmem:[#allocation2 + $0x1b0] sm:$0xff]
    %v893 = vsel %vm207, %v876, 0
    %v896 = vsel %vm207, %v881, 0
    %898 = vmatprep.subr.mxu0 0.0
    %899 = vmatpush1.msra.mxu0 0.0
    %900 = vmatprep.subr.mxu0 0.0
    %901 = vmatpush1.msra.mxu0 0.0
    %902 = vmatprep.subr.mxu0 0.0
    %903 = vmatpush1.msra.mxu0 0.0
    %904 = vmatprep.subr.mxu0 0.0
    %905 = vmatpush1.msra.mxu0 0.0
    %906 = vmatprep.subr.mxu0 0.0
    %907 = vmatpush1.msra.mxu0 0.0
    %908 = vmatprep.subr.mxu0 0.0
    %909 = vmatpush1.msra.mxu0 0.0
    %910 = vmatprep.subr.mxu0 0.0
    %911 = vmatpush1.msra.mxu0 0.0
    %912 = vmatprep.subr.mxu0 0.0
    %913 = vmatpush1.msra.mxu0 0.0
    %914 = vmatprep.subr.mxu0 0.0
    %915 = vmatpush1.msra.mxu0 0.0
    %916 = vmatprep.subr.mxu0 0.0
    %917 = vmatpush1.msra.mxu0 0.0
    %918 = vmatprep.subr.mxu0 0.0
    %919 = vmatpush1.msra.mxu0 0.0
    %920 = vmatprep.subr.mxu0 0.0
    %921 = vmatpush1.msra.mxu0 0.0
    %922 = vmatprep.subr.mxu0 0.0
    %923 = vmatpush1.msra.mxu0 %v891
    %924 = vmatprep.subr.mxu0 0.0
    %925 = vmatpush1.msra.mxu0 %v890
    %926 = vmatprep.subr.mxu0 0.0
    %927 = vmatpush1.msra.mxu0 %v889
    %928 = vmatprep.subr.mxu0 0.0
    %929 = vmatpush1.msra.mxu0 %v888
    %930 = vmatprep.subr.mxu0 0.0
    %931 = vmatpush2.msra.mxu0 0.0
    %932 = vmatprep.subr.mxu0 0.0
    %933 = vmatpush2.msra.mxu0 0.0
    %934 = vmatprep.subr.mxu0 0.0
    %935 = vmatpush2.msra.mxu0 0.0
    %936 = vmatprep.subr.mxu0 0.0
    %937 = vmatpush2.msra.mxu0 0.0
    %938 = vmatprep.subr.mxu0 0.0
    %939 = vmatpush2.msra.mxu0 0.0
    %940 = vmatprep.subr.mxu0 0.0
    %941 = vmatpush2.msra.mxu0 0.0
    %942 = vmatprep.subr.mxu0 0.0
    %943 = vmatpush2.msra.mxu0 0.0
    %944 = vmatprep.subr.mxu0 0.0
    %945 = vmatpush2.msra.mxu0 0.0
    %946 = vmatprep.subr.mxu0 0.0
    %947 = vmatpush2.msra.mxu0 0.0
    %948 = vmatprep.subr.mxu0 0.0
    %949 = vmatpush2.msra.mxu0 0.0
    %950 = vmatprep.subr.mxu0 0.0
    %951 = vmatpush2.msra.mxu0 0.0
    %952 = vmatprep.subr.mxu0 0.0
    %953 = vmatpush2.msra.mxu0 0.0
    %954 = vmatprep.subr.mxu0 0.0
    %955 = vmatpush2.msra.mxu0 0.0
    %956 = vmatprep.subr.mxu0 0.0
    %957 = vmatpush2.msra.mxu0 0.0
    %958 = vmatprep.subr.mxu0 0.0
    %959 = vmatpush2.msra.mxu0 0.0
    %960 = vmatprep.subr.mxu0 0.0
    %961 = vmatpush2.msra.mxu0 0.0
    %962 = vmatprep.mubr.f32.mxu0 0.0
    %963 = vmatmul.mubr.f32.gmra.mxu0 %v893
    %v964 = vpop.f32.mrf.mxu0
    %v965 = vadd.f32 0.0, %v964
    %v966 = vpop.f32.mrf.mxu0
    %967 = vmatprep.mubr.f32.mxu0 0.0
    %968 = vmatmul.mubr.f32.gmra.mxu0 %v896
    %v969 = vpop.f32.mrf.mxu0
    %v970 = vadd.f32 0.0, %v969
    %v971 = vpop.f32.mrf.mxu0
    %972 = vdwg.mxu0
    %973 = vmatprep.subr.mxu0 0.0
    %974 = vmatpush1.msra.mxu0 0.0
    %975 = vmatprep.subr.mxu0 0.0
    %976 = vmatpush1.msra.mxu0 0.0
    %977 = vmatprep.subr.mxu0 0.0
    %978 = vmatpush1.msra.mxu0 0.0
    %979 = vmatprep.subr.mxu0 0.0
    %980 = vmatpush1.msra.mxu0 0.0
    %981 = vmatprep.subr.mxu0 0.0
    %982 = vmatpush1.msra.mxu0 0.0
    %983 = vmatprep.subr.mxu0 0.0
    %984 = vmatpush1.msra.mxu0 0.0
    %985 = vmatprep.subr.mxu0 0.0
    %986 = vmatpush1.msra.mxu0 0.0
    %987 = vmatprep.subr.mxu0 0.0
    %988 = vmatpush1.msra.mxu0 0.0
    %989 = vmatprep.subr.mxu0 0.0
    %990 = vmatpush1.msra.mxu0 0.0
    %991 = vmatprep.subr.mxu0 0.0
    %992 = vmatpush1.msra.mxu0 0.0
    %993 = vmatprep.subr.mxu0 0.0
    %994 = vmatpush1.msra.mxu0 0.0
    %995 = vmatprep.subr.mxu0 0.0
    %996 = vmatpush1.msra.mxu0 0.0
    %997 = vmatprep.subr.mxu0 0.0
    %998 = vmatpush1.msra.mxu0 %v887
    %999 = vmatprep.subr.mxu0 0.0
    %1000 = vmatpush1.msra.mxu0 %v886
    %1001 = vmatprep.subr.mxu0 0.0
    %1002 = vmatpush1.msra.mxu0 %v885
    %1003 = vmatprep.subr.mxu0 0.0
    %1004 = vmatpush1.msra.mxu0 %v884
    %1005 = vmatprep.subr.mxu0 0.0
    %1006 = vmatpush2.msra.mxu0 0.0
    %1007 = vmatprep.subr.mxu0 0.0
    %1008 = vmatpush2.msra.mxu0 0.0
    %1009 = vmatprep.subr.mxu0 0.0
    %1010 = vmatpush2.msra.mxu0 0.0
    %1011 = vmatprep.subr.mxu0 0.0
    %1012 = vmatpush2.msra.mxu0 0.0
    %1013 = vmatprep.subr.mxu0 0.0
    %1014 = vmatpush2.msra.mxu0 0.0
    %1015 = vmatprep.subr.mxu0 0.0
    %1016 = vmatpush2.msra.mxu0 0.0
    %1017 = vmatprep.subr.mxu0 0.0
    %1018 = vmatpush2.msra.mxu0 0.0
    %1019 = vmatprep.subr.mxu0 0.0
    %1020 = vmatpush2.msra.mxu0 0.0
    %1021 = vmatprep.subr.mxu0 0.0
    %1022 = vmatpush2.msra.mxu0 0.0
    %1023 = vmatprep.subr.mxu0 0.0
    %1024 = vmatpush2.msra.mxu0 0.0
    %1025 = vmatprep.subr.mxu0 0.0
    %1026 = vmatpush2.msra.mxu0 0.0
    %1027 = vmatprep.subr.mxu0 0.0
    %1028 = vmatpush2.msra.mxu0 0.0
    %1029 = vmatprep.subr.mxu0 0.0
    %1030 = vmatpush2.msra.mxu0 0.0
    %1031 = vmatprep.subr.mxu0 0.0
    %1032 = vmatpush2.msra.mxu0 0.0
    %1033 = vmatprep.subr.mxu0 0.0
    %1034 = vmatpush2.msra.mxu0 0.0
    %1035 = vmatprep.subr.mxu0 0.0
    %1036 = vmatpush2.msra.mxu0 0.0
    %1037 = vmatprep.mubr.f32.mxu0 0.0
    %1038 = vmatmul.mubr.f32.gmra.mxu0 %v650
    %v1039 = vpop.f32.mrf.mxu0
    %v1040 = vadd.f32 %v965, %v1039
    %v1041 = vpop.f32.mrf.mxu0
    %1042 = vmatprep.mubr.f32.mxu0 0.0
    %1043 = vmatmul.mubr.f32.gmra.mxu0 %v653
    %v1044 = vpop.f32.mrf.mxu0
    %v1045 = vadd.f32 %v970, %v1044
    %v1046 = vpop.f32.mrf.mxu0
    %1047 = vdwg.mxu0
    %v1048 = vld [vmem:[#allocation2 + $0x1c0] ss:$0 sm:$0xff]
    %v1049 = vadd.f32 %v1040, %v1048
    %v1050 = vadd.f32 %v1045, %v1048
    %vm1051 = vcmp.ge.f32.partialorder %v1049, 0.0
    %vm1052 = vcmp.ge.f32.partialorder %v1050, 0.0
    %v1053 = vmul.f32 %v1049, 0.01
    %v1054 = vmul.f32 %v1050, 0.01
    %v1055 = vsel %vm1051, %v1049, %v1053
    %v1056 = vsel %vm1052, %v1050, %v1054
    %v1057 = vld [vmem:[#allocation2 + $0x250] sm:$0xff]
    %v1058 = vld [vmem:[#allocation2 + $0x258] sm:$0xff]
    %v1059 = vld [vmem:[#allocation2 + $0x260] sm:$0xff]
    %v1060 = vld [vmem:[#allocation2 + $0x268] sm:$0xff]
    %v1061 = vld [vmem:[#allocation2 + $0x270] sm:$0xff]
    %v1062 = vld [vmem:[#allocation2 + $0x278] sm:$0xff]
    %v1063 = vld [vmem:[#allocation2 + $0x280] sm:$0xff]
    %v1064 = vld [vmem:[#allocation2 + $0x288] sm:$0xff]
    %v1065 = vld [vmem:[#allocation2 + $0x290] sm:$0xff]
    %v1066 = vld [vmem:[#allocation2 + $0x298] sm:$0xff]
    %v1067 = vld [vmem:[#allocation2 + $0x2a0] sm:$0xff]
    %v1068 = vld [vmem:[#allocation2 + $0x2a8] sm:$0xff]
    %v1069 = vld [vmem:[#allocation2 + $0x2b0] sm:$0xff]
    %v1070 = vld [vmem:[#allocation2 + $0x2b8] sm:$0xff]
    %v1071 = vld [vmem:[#allocation2 + $0x2c0] sm:$0xff]
    %v1072 = vld [vmem:[#allocation2 + $0x2c8] sm:$0xff]
    %vm1073 = vcmask 523264
    %v1075 = vsel %vm1073, %v1055, 0
    %v1078 = vsel %vm1073, %v1056, 0
    %1080 = vmatprep.subr.mxu0 0.0
    %1081 = vmatpush1.msra.mxu0 0.0
    %1082 = vmatprep.subr.mxu0 0.0
    %1083 = vmatpush1.msra.mxu0 0.0
    %1084 = vmatprep.subr.mxu0 0.0
    %1085 = vmatpush1.msra.mxu0 0.0
    %1086 = vmatprep.subr.mxu0 0.0
    %1087 = vmatpush1.msra.mxu0 0.0
    %1088 = vmatprep.subr.mxu0 0.0
    %1089 = vmatpush1.msra.mxu0 0.0
    %1090 = vmatprep.subr.mxu0 0.0
    %1091 = vmatpush1.msra.mxu0 0.0
    %1092 = vmatprep.subr.mxu0 0.0
    %1093 = vmatpush1.msra.mxu0 0.0
    %1094 = vmatprep.subr.mxu0 0.0
    %1095 = vmatpush1.msra.mxu0 0.0
    %1096 = vmatprep.subr.mxu0 %v1072
    %1097 = vmatpush1.msra.mxu0 %v1071
    %1098 = vmatprep.subr.mxu0 %v1070
    %1099 = vmatpush1.msra.mxu0 %v1069
    %1100 = vmatprep.subr.mxu0 %v1068
    %1101 = vmatpush1.msra.mxu0 %v1067
    %1102 = vmatprep.subr.mxu0 %v1066
    %1103 = vmatpush1.msra.mxu0 %v1065
    %1104 = vmatprep.subr.mxu0 %v1064
    %1105 = vmatpush1.msra.mxu0 %v1063
    %1106 = vmatprep.subr.mxu0 %v1062
    %1107 = vmatpush1.msra.mxu0 %v1061
    %1108 = vmatprep.subr.mxu0 %v1060
    %1109 = vmatpush1.msra.mxu0 %v1059
    %1110 = vmatprep.subr.mxu0 %v1058
    %1111 = vmatpush1.msra.mxu0 %v1057
    %1112 = vmatprep.subr.mxu0 0.0
    %1113 = vmatpush2.msra.mxu0 0.0
    %1114 = vmatprep.subr.mxu0 0.0
    %1115 = vmatpush2.msra.mxu0 0.0
    %1116 = vmatprep.subr.mxu0 0.0
    %1117 = vmatpush2.msra.mxu0 0.0
    %1118 = vmatprep.subr.mxu0 0.0
    %1119 = vmatpush2.msra.mxu0 0.0
    %1120 = vmatprep.subr.mxu0 0.0
    %1121 = vmatpush2.msra.mxu0 0.0
    %1122 = vmatprep.subr.mxu0 0.0
    %1123 = vmatpush2.msra.mxu0 0.0
    %1124 = vmatprep.subr.mxu0 0.0
    %1125 = vmatpush2.msra.mxu0 0.0
    %1126 = vmatprep.subr.mxu0 0.0
    %1127 = vmatpush2.msra.mxu0 0.0
    %1128 = vmatprep.subr.mxu0 0.0
    %1129 = vmatpush2.msra.mxu0 0.0
    %1130 = vmatprep.subr.mxu0 0.0
    %1131 = vmatpush2.msra.mxu0 0.0
    %1132 = vmatprep.subr.mxu0 0.0
    %1133 = vmatpush2.msra.mxu0 0.0
    %1134 = vmatprep.subr.mxu0 0.0
    %1135 = vmatpush2.msra.mxu0 0.0
    %1136 = vmatprep.subr.mxu0 0.0
    %1137 = vmatpush2.msra.mxu0 0.0
    %1138 = vmatprep.subr.mxu0 0.0
    %1139 = vmatpush2.msra.mxu0 0.0
    %1140 = vmatprep.subr.mxu0 0.0
    %1141 = vmatpush2.msra.mxu0 0.0
    %1142 = vmatprep.subr.mxu0 0.0
    %1143 = vmatpush2.msra.mxu0 0.0
    %1144 = vmatprep.mubr.f32.mxu0 0.0
    %1145 = vmatmul.mubr.f32.gmra.mxu0 %v1075
    %v1146 = vpop.f32.mrf.mxu0
    %v1147 = vadd.f32 0.0, %v1146
    %v1148 = vpop.f32.mrf.mxu0
    %v1149 = vadd.f32 0.0, %v1148
    %1150 = vmatprep.mubr.f32.mxu0 0.0
    %1151 = vmatmul.mubr.f32.gmra.mxu0 %v1078
    %v1152 = vpop.f32.mrf.mxu0
    %v1153 = vadd.f32 0.0, %v1152
    %v1154 = vpop.f32.mrf.mxu0
    %v1155 = vadd.f32 0.0, %v1154
    %1156 = vdwg.mxu0
    %v1157 = vadd.f32 %v799, %v1147
    %v1158 = vadd.f32 %v801, %v1149
    %v1159 = vadd.f32 %v805, %v1153
    %v1160 = vadd.f32 %v807, %v1155
    %1161 = vmatprep.subr.mxu0 0.0
    %1162 = vmatpush1.msra.mxu0 0.0
    %1163 = vmatprep.subr.mxu0 0.0
    %1164 = vmatpush1.msra.mxu0 0.0
    %1165 = vmatprep.subr.mxu0 0.0
    %1166 = vmatpush1.msra.mxu0 0.0
    %1167 = vmatprep.subr.mxu0 0.0
    %1168 = vmatpush1.msra.mxu0 0.0
    %1169 = vmatprep.subr.mxu0 0.0
    %1170 = vmatpush1.msra.mxu0 0.0
    %1171 = vmatprep.subr.mxu0 0.0
    %1172 = vmatpush1.msra.mxu0 0.0
    %1173 = vmatprep.subr.mxu0 0.0
    %1174 = vmatpush1.msra.mxu0 0.0
    %1175 = vmatprep.subr.mxu0 0.0
    %1176 = vmatpush1.msra.mxu0 0.0
    %1177 = vmatprep.subr.mxu0 0.0
    %1178 = vmatpush1.msra.mxu0 0.0
    %1179 = vmatprep.subr.mxu0 0.0
    %1180 = vmatpush1.msra.mxu0 0.0
    %1181 = vmatprep.subr.mxu0 0.0
    %1182 = vmatpush1.msra.mxu0 0.0
    %1183 = vmatprep.subr.mxu0 0.0
    %1184 = vmatpush1.msra.mxu0 0.0
    %1185 = vmatprep.subr.mxu0 0.0
    %1186 = vmatpush1.msra.mxu0 0.0
    %1187 = vmatprep.subr.mxu0 0.0
    %1188 = vmatpush1.msra.mxu0 0.0
    %1189 = vmatprep.subr.mxu0 0.0
    %1190 = vmatpush1.msra.mxu0 %v1160
    %1191 = vmatprep.subr.mxu0 0.0
    %1192 = vmatpush1.msra.mxu0 %v1158
    %1193 = vmatprep.subr.mxu0 0.0
    %1194 = vmatpush2.msra.mxu0 0.0
    %1195 = vmatprep.subr.mxu0 0.0
    %1196 = vmatpush2.msra.mxu0 0.0
    %1197 = vmatprep.subr.mxu0 0.0
    %1198 = vmatpush2.msra.mxu0 0.0
    %1199 = vmatprep.subr.mxu0 0.0
    %1200 = vmatpush2.msra.mxu0 0.0
    %1201 = vmatprep.subr.mxu0 0.0
    %1202 = vmatpush2.msra.mxu0 0.0
    %1203 = vmatprep.subr.mxu0 0.0
    %1204 = vmatpush2.msra.mxu0 0.0
    %1205 = vmatprep.subr.mxu0 0.0
    %1206 = vmatpush2.msra.mxu0 0.0
    %1207 = vmatprep.subr.mxu0 0.0
    %1208 = vmatpush2.msra.mxu0 0.0
    %1209 = vmatprep.subr.mxu0 0.0
    %1210 = vmatpush2.msra.mxu0 0.0
    %1211 = vmatprep.subr.mxu0 0.0
    %1212 = vmatpush2.msra.mxu0 0.0
    %1213 = vmatprep.subr.mxu0 0.0
    %1214 = vmatpush2.msra.mxu0 0.0
    %1215 = vmatprep.subr.mxu0 0.0
    %1216 = vmatpush2.msra.mxu0 0.0
    %1217 = vmatprep.subr.mxu0 0.0
    %1218 = vmatpush2.msra.mxu0 0.0
    %1219 = vmatprep.subr.mxu0 0.0
    %1220 = vmatpush2.msra.mxu0 0.0
    %1221 = vmatprep.subr.mxu0 0.0
    %1222 = vmatpush2.msra.mxu0 0.0
    %1223 = vmatprep.subr.mxu0 0.0
    %1224 = vmatpush2.msra.mxu0 0.0
    %1225 = vmatprep.mubr.f32.mxu0 0.0
    %1226 = vmatmul.mubr.f32.gmra.mxu0 %v119
    %v1227 = vpop.f32.mrf.mxu0
    %v1228 = vadd.f32 0.0, %v1227
    %v1229 = vpop.f32.mrf.mxu0
    %1230 = vmatprep.mubr.f32.mxu0 0.0
    %1231 = vmatmul.mubr.f32.gmra.mxu0 %v122
    %v1232 = vpop.f32.mrf.mxu0
    %v1233 = vadd.f32 0.0, %v1232
    %v1234 = vpop.f32.mrf.mxu0
    %1235 = vdwg.mxu0
    %v1236 = vadd.f32 %v1157, %v1228
    %v1237 = vadd.f32 %v1159, %v1233
    %v1238 = vld [vmem:[#allocation2 + $0x2d0] ss:$0 sm:$0xff]
    %v1239 = vadd.f32 %v1236, %v1238
    %v1240 = vadd.f32 %v1237, %v1238
    %vm1241 = vcmp.ge.f32.partialorder %v1239, 0.0
    %vm1242 = vcmp.ge.f32.partialorder %v1240, 0.0
    %v1243 = vmul.f32 %v1239, 0.01
    %v1244 = vmul.f32 %v1240, 0.01
    %v1245 = vsel %vm1241, %v1239, %v1243
    %v1246 = vsel %vm1242, %v1240, %v1244
    %v1247 = vlaneseq
    %v1248 = vshrl.u32 %v1247, 7
    %v1249 = vrot.slane %v1245, 4
    %v1250 = vmax.f32 %v1245, %v1249
    %v1251 = vrot.slane %v1250, 2
    %v1252 = vmax.f32 %v1250, %v1251
    %v1253 = vrot.slane %v1252, 1
    %v1254 = vmax.f32 %v1252, %v1253
    %v1255 = vrot.slane %v1245, 4
    %v1256 = vadd.f32 %v1245, %v1255
    %v1257 = vrot.slane %v1256, 2
    %v1258 = vadd.f32 %v1256, %v1257
    %v1259 = vrot.slane %v1258, 1
    %v1260 = vadd.f32 %v1258, %v1259
    %v1261 = vmul.f32 %v1260, 0.125
    %vm1262 = vcmp.eq.s32.totalorder %v1248, 0
    %v1263 = vsel %vm1262, %v1254, 0.0
    %v1264 = vsel %vm1262, %v1261, 0.0
    %v1265 = vrot.slane %v1246, 4
    %v1266 = vmax.f32 %v1246, %v1265
    %v1267 = vrot.slane %v1266, 2
    %v1268 = vmax.f32 %v1266, %v1267
    %v1269 = vrot.slane %v1268, 1
    %v1270 = vmax.f32 %v1268, %v1269
    %v1271 = vrot.slane %v1246, 4
    %v1272 = vadd.f32 %v1246, %v1271
    %v1273 = vrot.slane %v1272, 2
    %v1274 = vadd.f32 %v1272, %v1273
    %v1275 = vrot.slane %v1274, 1
    %v1276 = vadd.f32 %v1274, %v1275
    %v1277 = vmul.f32 %v1276, 0.125
    %vm1278 = vcmp.eq.s32.totalorder %v1248, 1
    %v1279 = vsel %vm1278, %v1270, %v1263
    %v1280 = vsel %vm1278, %v1277, %v1264
    %v1281 = vld [vmem:[#allocation2 + $0x2e0] sm:$0xff]
    %v1282 = vld [vmem:[#allocation2 + $0x2f0] sm:$0xff]
    %v1283 = vld [vmem:[#allocation2 + $0x300] sm:$0xff]
    %v1284 = vld [vmem:[#allocation2 + $0x310] sm:$0xff]
    %v1285 = vld [vmem:[#allocation2 + $0x320] sm:$0xff]
    %v1286 = vld [vmem:[#allocation2 + $0x330] sm:$0xff]
    %v1287 = vld [vmem:[#allocation2 + $0x340] sm:$0xff]
    %v1288 = vld [vmem:[#allocation2 + $0x350] sm:$0xff]
    %v1289 = vld [vmem:[#allocation2 + $0x360] sm:$0xff]
    %v1290 = vld [vmem:[#allocation2 + $0x370] sm:$0xff]
    %v1291 = vld [vmem:[#allocation2 + $0x380] sm:$0xff]
    %v1292 = vld [vmem:[#allocation2 + $0x390] sm:$0xff]
    %v1293 = vld [vmem:[#allocation2 + $0x3a0] sm:$0xff]
    %v1294 = vld [vmem:[#allocation2 + $0x3b0] sm:$0xff]
    %v1295 = vld [vmem:[#allocation2 + $0x3c0] sm:$0xff]
    %v1296 = vld [vmem:[#allocation2 + $0x3d0] sm:$0xff]
    %v1297 = vld [vmem:[#allocation2 + $0x3e0] sm:$0xff]
    %v1298 = vld [vmem:[#allocation2 + $0x3f0] sm:$0xff]
    %v1299 = vld [vmem:[#allocation2 + $0x400] sm:$0xff]
    %v1300 = vld [vmem:[#allocation2 + $0x410] sm:$0xff]
    %v1301 = vld [vmem:[#allocation2 + $0x420] sm:$0xff]
    %v1302 = vld [vmem:[#allocation2 + $0x430] sm:$0xff]
    %v1303 = vld [vmem:[#allocation2 + $0x440] sm:$0xff]
    %v1304 = vld [vmem:[#allocation2 + $0x450] sm:$0xff]
    %v1305 = vld [vmem:[#allocation2 + $0x460] sm:$0xff]
    %v1306 = vld [vmem:[#allocation2 + $0x470] sm:$0xff]
    %v1307 = vld [vmem:[#allocation2 + $0x480] sm:$0xff]
    %v1308 = vld [vmem:[#allocation2 + $0x490] sm:$0xff]
    %v1309 = vld [vmem:[#allocation2 + $0x4a0] sm:$0xff]
    %v1310 = vld [vmem:[#allocation2 + $0x4b0] sm:$0xff]
    %v1311 = vld [vmem:[#allocation2 + $0x4c0] sm:$0xff]
    %v1312 = vld [vmem:[#allocation2 + $0x4d0] sm:$0xff]
    %1313 = vmatprep.subr.mxu0 0.0
    %1314 = vmatpush1.msra.mxu0 %v1312
    %1315 = vmatprep.subr.mxu0 0.0
    %1316 = vmatpush1.msra.mxu0 %v1311
    %1317 = vmatprep.subr.mxu0 0.0
    %1318 = vmatpush1.msra.mxu0 %v1310
    %1319 = vmatprep.subr.mxu0 0.0
    %1320 = vmatpush1.msra.mxu0 %v1309
    %1321 = vmatprep.subr.mxu0 0.0
    %1322 = vmatpush1.msra.mxu0 %v1308
    %1323 = vmatprep.subr.mxu0 0.0
    %1324 = vmatpush1.msra.mxu0 %v1307
    %1325 = vmatprep.subr.mxu0 0.0
    %1326 = vmatpush1.msra.mxu0 %v1306
    %1327 = vmatprep.subr.mxu0 0.0
    %1328 = vmatpush1.msra.mxu0 %v1305
    %1329 = vmatprep.subr.mxu0 0.0
    %1330 = vmatpush1.msra.mxu0 %v1304
    %1331 = vmatprep.subr.mxu0 0.0
    %1332 = vmatpush1.msra.mxu0 %v1303
    %1333 = vmatprep.subr.mxu0 0.0
    %1334 = vmatpush1.msra.mxu0 %v1302
    %1335 = vmatprep.subr.mxu0 0.0
    %1336 = vmatpush1.msra.mxu0 %v1301
    %1337 = vmatprep.subr.mxu0 0.0
    %1338 = vmatpush1.msra.mxu0 %v1300
    %1339 = vmatprep.subr.mxu0 0.0
    %1340 = vmatpush1.msra.mxu0 %v1299
    %1341 = vmatprep.subr.mxu0 0.0
    %1342 = vmatpush1.msra.mxu0 %v1298
    %1343 = vmatprep.subr.mxu0 0.0
    %1344 = vmatpush1.msra.mxu0 %v1297
    %1345 = vmatprep.subr.mxu0 0.0
    %1346 = vmatpush2.msra.mxu0 0.0
    %1347 = vmatprep.subr.mxu0 0.0
    %1348 = vmatpush2.msra.mxu0 0.0
    %1349 = vmatprep.subr.mxu0 0.0
    %1350 = vmatpush2.msra.mxu0 0.0
    %1351 = vmatprep.subr.mxu0 0.0
    %1352 = vmatpush2.msra.mxu0 0.0
    %1353 = vmatprep.subr.mxu0 0.0
    %1354 = vmatpush2.msra.mxu0 0.0
    %1355 = vmatprep.subr.mxu0 0.0
    %1356 = vmatpush2.msra.mxu0 0.0
    %1357 = vmatprep.subr.mxu0 0.0
    %1358 = vmatpush2.msra.mxu0 0.0
    %1359 = vmatprep.subr.mxu0 0.0
    %1360 = vmatpush2.msra.mxu0 0.0
    %1361 = vmatprep.subr.mxu0 0.0
    %1362 = vmatpush2.msra.mxu0 0.0
    %1363 = vmatprep.subr.mxu0 0.0
    %1364 = vmatpush2.msra.mxu0 0.0
    %1365 = vmatprep.subr.mxu0 0.0
    %1366 = vmatpush2.msra.mxu0 0.0
    %1367 = vmatprep.subr.mxu0 0.0
    %1368 = vmatpush2.msra.mxu0 0.0
    %1369 = vmatprep.subr.mxu0 0.0
    %1370 = vmatpush2.msra.mxu0 0.0
    %1371 = vmatprep.subr.mxu0 0.0
    %1372 = vmatpush2.msra.mxu0 0.0
    %1373 = vmatprep.subr.mxu0 0.0
    %1374 = vmatpush2.msra.mxu0 0.0
    %1375 = vmatprep.subr.mxu0 0.0
    %1376 = vmatpush2.msra.mxu0 0.0
    %1377 = vmatprep.mubr.f32.mxu0 0.0
    %1378 = vmatmul.mubr.f32.gmra.mxu0 %v1280
    %v1379 = vpop.f32.mrf.mxu0
    %v1380 = vadd.f32 0.0, %v1379
    %v1381 = vpop.f32.mrf.mxu0
    %1382 = vdwg.mxu0
    %1383 = vmatprep.subr.mxu0 0.0
    %1384 = vmatpush1.msra.mxu0 %v1296
    %1385 = vmatprep.subr.mxu0 0.0
    %1386 = vmatpush1.msra.mxu0 %v1295
    %1387 = vmatprep.subr.mxu0 0.0
    %1388 = vmatpush1.msra.mxu0 %v1294
    %1389 = vmatprep.subr.mxu0 0.0
    %1390 = vmatpush1.msra.mxu0 %v1293
    %1391 = vmatprep.subr.mxu0 0.0
    %1392 = vmatpush1.msra.mxu0 %v1292
    %1393 = vmatprep.subr.mxu0 0.0
    %1394 = vmatpush1.msra.mxu0 %v1291
    %1395 = vmatprep.subr.mxu0 0.0
    %1396 = vmatpush1.msra.mxu0 %v1290
    %1397 = vmatprep.subr.mxu0 0.0
    %1398 = vmatpush1.msra.mxu0 %v1289
    %1399 = vmatprep.subr.mxu0 0.0
    %1400 = vmatpush1.msra.mxu0 %v1288
    %1401 = vmatprep.subr.mxu0 0.0
    %1402 = vmatpush1.msra.mxu0 %v1287
    %1403 = vmatprep.subr.mxu0 0.0
    %1404 = vmatpush1.msra.mxu0 %v1286
    %1405 = vmatprep.subr.mxu0 0.0
    %1406 = vmatpush1.msra.mxu0 %v1285
    %1407 = vmatprep.subr.mxu0 0.0
    %1408 = vmatpush1.msra.mxu0 %v1284
    %1409 = vmatprep.subr.mxu0 0.0
    %1410 = vmatpush1.msra.mxu0 %v1283
    %1411 = vmatprep.subr.mxu0 0.0
    %1412 = vmatpush1.msra.mxu0 %v1282
    %1413 = vmatprep.subr.mxu0 0.0
    %1414 = vmatpush1.msra.mxu0 %v1281
    %1415 = vmatprep.subr.mxu0 0.0
    %1416 = vmatpush2.msra.mxu0 0.0
    %1417 = vmatprep.subr.mxu0 0.0
    %1418 = vmatpush2.msra.mxu0 0.0
    %1419 = vmatprep.subr.mxu0 0.0
    %1420 = vmatpush2.msra.mxu0 0.0
    %1421 = vmatprep.subr.mxu0 0.0
    %1422 = vmatpush2.msra.mxu0 0.0
    %1423 = vmatprep.subr.mxu0 0.0
    %1424 = vmatpush2.msra.mxu0 0.0
    %1425 = vmatprep.subr.mxu0 0.0
    %1426 = vmatpush2.msra.mxu0 0.0
    %1427 = vmatprep.subr.mxu0 0.0
    %1428 = vmatpush2.msra.mxu0 0.0
    %1429 = vmatprep.subr.mxu0 0.0
    %1430 = vmatpush2.msra.mxu0 0.0
    %1431 = vmatprep.subr.mxu0 0.0
    %1432 = vmatpush2.msra.mxu0 0.0
    %1433 = vmatprep.subr.mxu0 0.0
    %1434 = vmatpush2.msra.mxu0 0.0
    %1435 = vmatprep.subr.mxu0 0.0
    %1436 = vmatpush2.msra.mxu0 0.0
    %1437 = vmatprep.subr.mxu0 0.0
    %1438 = vmatpush2.msra.mxu0 0.0
    %1439 = vmatprep.subr.mxu0 0.0
    %1440 = vmatpush2.msra.mxu0 0.0
    %1441 = vmatprep.subr.mxu0 0.0
    %1442 = vmatpush2.msra.mxu0 0.0
    %1443 = vmatprep.subr.mxu0 0.0
    %1444 = vmatpush2.msra.mxu0 0.0
    %1445 = vmatprep.subr.mxu0 0.0
    %1446 = vmatpush2.msra.mxu0 0.0
    %1447 = vmatprep.mubr.f32.mxu0 0.0
    %1448 = vmatmul.mubr.f32.gmra.mxu0 %v1279
    %v1449 = vpop.f32.mrf.mxu0
    %v1450 = vadd.f32 %v1380, %v1449
    %v1451 = vpop.f32.mrf.mxu0
    %1452 = vdwg.mxu0
    %v1453 = vld [vmem:[#allocation2 + $0x4e0] ss:$0 sm:$0xff]
    %v1454 = vadd.f32 %v1450, %v1453
    %v1455 = vld [vmem:[#allocation2 + $0x4f0] ss:$0 sm:$0xff]
    %v1456 = vld [vmem:[#allocation2 + $0x500] ss:$0 sm:$0xff]
    %v1457 = vld [vmem:[#allocation2 + $0x510] sm:$0xff]
    %v1458 = vld [vmem:[#allocation2 + $0x520] sm:$0xff]
    %v1459 = vld [vmem:[#allocation2 + $0x530] sm:$0xff]
    %v1460 = vld [vmem:[#allocation2 + $0x540] sm:$0xff]
    %v1461 = vld [vmem:[#allocation2 + $0x550] sm:$0xff]
    %v1462 = vld [vmem:[#allocation2 + $0x560] sm:$0xff]
    %v1463 = vld [vmem:[#allocation2 + $0x570] sm:$0xff]
    %v1464 = vld [vmem:[#allocation2 + $0x580] sm:$0xff]
    %v1466 = vsel %vm1073, %v1454, 0
    %1468 = vmatprep.subr.mxu0 0.0
    %1469 = vmatpush1.msra.mxu0 0.0
    %1470 = vmatprep.subr.mxu0 0.0
    %1471 = vmatpush1.msra.mxu0 0.0
    %1472 = vmatprep.subr.mxu0 0.0
    %1473 = vmatpush1.msra.mxu0 0.0
    %1474 = vmatprep.subr.mxu0 0.0
    %1475 = vmatpush1.msra.mxu0 0.0
    %1476 = vmatprep.subr.mxu0 0.0
    %1477 = vmatpush1.msra.mxu0 0.0
    %1478 = vmatprep.subr.mxu0 0.0
    %1479 = vmatpush1.msra.mxu0 0.0
    %1480 = vmatprep.subr.mxu0 0.0
    %1481 = vmatpush1.msra.mxu0 0.0
    %1482 = vmatprep.subr.mxu0 0.0
    %1483 = vmatpush1.msra.mxu0 0.0
    %1484 = vmatprep.subr.mxu0 0.0
    %1485 = vmatpush1.msra.mxu0 %v1464
    %1486 = vmatprep.subr.mxu0 0.0
    %1487 = vmatpush1.msra.mxu0 %v1463
    %1488 = vmatprep.subr.mxu0 0.0
    %1489 = vmatpush1.msra.mxu0 %v1462
    %1490 = vmatprep.subr.mxu0 0.0
    %1491 = vmatpush1.msra.mxu0 %v1461
    %1492 = vmatprep.subr.mxu0 0.0
    %1493 = vmatpush1.msra.mxu0 %v1460
    %1494 = vmatprep.subr.mxu0 0.0
    %1495 = vmatpush1.msra.mxu0 %v1459
    %1496 = vmatprep.subr.mxu0 0.0
    %1497 = vmatpush1.msra.mxu0 %v1458
    %1498 = vmatprep.subr.mxu0 0.0
    %1499 = vmatpush1.msra.mxu0 %v1457
    %1500 = vmatprep.subr.mxu0 0.0
    %1501 = vmatpush2.msra.mxu0 0.0
    %1502 = vmatprep.subr.mxu0 0.0
    %1503 = vmatpush2.msra.mxu0 0.0
    %1504 = vmatprep.subr.mxu0 0.0
    %1505 = vmatpush2.msra.mxu0 0.0
    %1506 = vmatprep.subr.mxu0 0.0
    %1507 = vmatpush2.msra.mxu0 0.0
    %1508 = vmatprep.subr.mxu0 0.0
    %1509 = vmatpush2.msra.mxu0 0.0
    %1510 = vmatprep.subr.mxu0 0.0
    %1511 = vmatpush2.msra.mxu0 0.0
    %1512 = vmatprep.subr.mxu0 0.0
    %1513 = vmatpush2.msra.mxu0 0.0
    %1514 = vmatprep.subr.mxu0 0.0
    %1515 = vmatpush2.msra.mxu0 0.0
    %1516 = vmatprep.subr.mxu0 0.0
    %1517 = vmatpush2.msra.mxu0 0.0
    %1518 = vmatprep.subr.mxu0 0.0
    %1519 = vmatpush2.msra.mxu0 0.0
    %1520 = vmatprep.subr.mxu0 0.0
    %1521 = vmatpush2.msra.mxu0 0.0
    %1522 = vmatprep.subr.mxu0 0.0
    %1523 = vmatpush2.msra.mxu0 0.0
    %1524 = vmatprep.subr.mxu0 0.0
    %1525 = vmatpush2.msra.mxu0 0.0
    %1526 = vmatprep.subr.mxu0 0.0
    %1527 = vmatpush2.msra.mxu0 0.0
    %1528 = vmatprep.subr.mxu0 0.0
    %1529 = vmatpush2.msra.mxu0 0.0
    %1530 = vmatprep.subr.mxu0 0.0
    %1531 = vmatpush2.msra.mxu0 0.0
    %1532 = vmatprep.mubr.f32.mxu0 0.0
    %1533 = vmatmul.mubr.f32.gmra.mxu0 %v1466
    %v1534 = vpop.f32.mrf.mxu0
    %v1535 = vadd.f32 0.0, %v1534
    %v1536 = vpop.f32.mrf.mxu0
    %1537 = vdwg.mxu0
    %v1538 = vsub.f32 %v1454, %v1535
    %v1539 = vmul.f32 %v1538, %v1538
    %v1541 = vsel %vm1073, %v1539, 0
    %1543 = vmatprep.subr.mxu0 0.0
    %1544 = vmatpush1.msra.mxu0 0.0
    %1545 = vmatprep.subr.mxu0 0.0
    %1546 = vmatpush1.msra.mxu0 0.0
    %1547 = vmatprep.subr.mxu0 0.0
    %1548 = vmatpush1.msra.mxu0 0.0
    %1549 = vmatprep.subr.mxu0 0.0
    %1550 = vmatpush1.msra.mxu0 0.0
    %1551 = vmatprep.subr.mxu0 0.0
    %1552 = vmatpush1.msra.mxu0 0.0
    %1553 = vmatprep.subr.mxu0 0.0
    %1554 = vmatpush1.msra.mxu0 0.0
    %1555 = vmatprep.subr.mxu0 0.0
    %1556 = vmatpush1.msra.mxu0 0.0
    %1557 = vmatprep.subr.mxu0 0.0
    %1558 = vmatpush1.msra.mxu0 0.0
    %1559 = vmatprep.subr.mxu0 0.0
    %1560 = vmatpush1.msra.mxu0 %v1464
    %1561 = vmatprep.subr.mxu0 0.0
    %1562 = vmatpush1.msra.mxu0 %v1463
    %1563 = vmatprep.subr.mxu0 0.0
    %1564 = vmatpush1.msra.mxu0 %v1462
    %1565 = vmatprep.subr.mxu0 0.0
    %1566 = vmatpush1.msra.mxu0 %v1461
    %1567 = vmatprep.subr.mxu0 0.0
    %1568 = vmatpush1.msra.mxu0 %v1460
    %1569 = vmatprep.subr.mxu0 0.0
    %1570 = vmatpush1.msra.mxu0 %v1459
    %1571 = vmatprep.subr.mxu0 0.0
    %1572 = vmatpush1.msra.mxu0 %v1458
    %1573 = vmatprep.subr.mxu0 0.0
    %1574 = vmatpush1.msra.mxu0 %v1457
    %1575 = vmatprep.subr.mxu0 0.0
    %1576 = vmatpush2.msra.mxu0 0.0
    %1577 = vmatprep.subr.mxu0 0.0
    %1578 = vmatpush2.msra.mxu0 0.0
    %1579 = vmatprep.subr.mxu0 0.0
    %1580 = vmatpush2.msra.mxu0 0.0
    %1581 = vmatprep.subr.mxu0 0.0
    %1582 = vmatpush2.msra.mxu0 0.0
    %1583 = vmatprep.subr.mxu0 0.0
    %1584 = vmatpush2.msra.mxu0 0.0
    %1585 = vmatprep.subr.mxu0 0.0
    %1586 = vmatpush2.msra.mxu0 0.0
    %1587 = vmatprep.subr.mxu0 0.0
    %1588 = vmatpush2.msra.mxu0 0.0
    %1589 = vmatprep.subr.mxu0 0.0
    %1590 = vmatpush2.msra.mxu0 0.0
    %1591 = vmatprep.subr.mxu0 0.0
    %1592 = vmatpush2.msra.mxu0 0.0
    %1593 = vmatprep.subr.mxu0 0.0
    %1594 = vmatpush2.msra.mxu0 0.0
    %1595 = vmatprep.subr.mxu0 0.0
    %1596 = vmatpush2.msra.mxu0 0.0
    %1597 = vmatprep.subr.mxu0 0.0
    %1598 = vmatpush2.msra.mxu0 0.0
    %1599 = vmatprep.subr.mxu0 0.0
    %1600 = vmatpush2.msra.mxu0 0.0
    %1601 = vmatprep.subr.mxu0 0.0
    %1602 = vmatpush2.msra.mxu0 0.0
    %1603 = vmatprep.subr.mxu0 0.0
    %1604 = vmatpush2.msra.mxu0 0.0
    %1605 = vmatprep.subr.mxu0 0.0
    %1606 = vmatpush2.msra.mxu0 0.0
    %1607 = vmatprep.mubr.f32.mxu0 0.0
    %1608 = vmatmul.mubr.f32.gmra.mxu0 %v1541
    %v1609 = vpop.f32.mrf.mxu0
    %v1610 = vadd.f32 1e-05, %v1609
    %v1611 = vpop.f32.mrf.mxu0
    %1612 = vdwg.mxu0
    %v1613 = vrsqrt.pop %v1610
    %v1614 = vmul.f32 %v1538, %v1613
    %v1615 = vmul.f32 %v1614, %v1455
    %v1616 = vadd.f32 %v1615, %v1456
    %vm1617 = vcmp.ge.f32.partialorder %v1616, 0.0
    %v1618 = vmul.f32 %v1616, 0.01
    %v1619 = vsel %vm1617, %v1616, %v1618
    %v1620 = vld [vmem:[#allocation2 + $0x590] sm:$0xff]
    %v1621 = vld [vmem:[#allocation2 + $0x5a0] sm:$0xff]
    %v1622 = vld [vmem:[#allocation2 + $0x5b0] sm:$0xff]
    %v1623 = vld [vmem:[#allocation2 + $0x5c0] sm:$0xff]
    %v1624 = vld [vmem:[#allocation2 + $0x5d0] sm:$0xff]
    %v1625 = vld [vmem:[#allocation2 + $0x5e0] sm:$0xff]
    %v1626 = vld [vmem:[#allocation2 + $0x5f0] sm:$0xff]
    %v1627 = vld [vmem:[#allocation2 + $0x600] sm:$0xff]
    %v1628 = vld [vmem:[#allocation2 + $0x610] ss:$0 sm:$0xff]
    %v1630 = vsel %vm1073, %v1619, 0
    %1632 = vmatprep.subr.mxu0 0.0
    %1633 = vmatpush1.msra.mxu0 0.0
    %1634 = vmatprep.subr.mxu0 0.0
    %1635 = vmatpush1.msra.mxu0 0.0
    %1636 = vmatprep.subr.mxu0 0.0
    %1637 = vmatpush1.msra.mxu0 0.0
    %1638 = vmatprep.subr.mxu0 0.0
    %1639 = vmatpush1.msra.mxu0 0.0
    %1640 = vmatprep.subr.mxu0 0.0
    %1641 = vmatpush1.msra.mxu0 0.0
    %1642 = vmatprep.subr.mxu0 0.0
    %1643 = vmatpush1.msra.mxu0 0.0
    %1644 = vmatprep.subr.mxu0 0.0
    %1645 = vmatpush1.msra.mxu0 0.0
    %1646 = vmatprep.subr.mxu0 0.0
    %1647 = vmatpush1.msra.mxu0 0.0
    %1648 = vmatprep.subr.mxu0 0.0
    %1649 = vmatpush1.msra.mxu0 %v1627
    %1650 = vmatprep.subr.mxu0 0.0
    %1651 = vmatpush1.msra.mxu0 %v1626
    %1652 = vmatprep.subr.mxu0 0.0
    %1653 = vmatpush1.msra.mxu0 %v1625
    %1654 = vmatprep.subr.mxu0 0.0
    %1655 = vmatpush1.msra.mxu0 %v1624
    %1656 = vmatprep.subr.mxu0 0.0
    %1657 = vmatpush1.msra.mxu0 %v1623
    %1658 = vmatprep.subr.mxu0 0.0
    %1659 = vmatpush1.msra.mxu0 %v1622
    %1660 = vmatprep.subr.mxu0 0.0
    %1661 = vmatpush1.msra.mxu0 %v1621
    %1662 = vmatprep.subr.mxu0 0.0
    %1663 = vmatpush1.msra.mxu0 %v1620
    %1664 = vmatprep.subr.mxu0 0.0
    %1665 = vmatpush2.msra.mxu0 0.0
    %1666 = vmatprep.subr.mxu0 0.0
    %1667 = vmatpush2.msra.mxu0 0.0
    %1668 = vmatprep.subr.mxu0 0.0
    %1669 = vmatpush2.msra.mxu0 0.0
    %1670 = vmatprep.subr.mxu0 0.0
    %1671 = vmatpush2.msra.mxu0 0.0
    %1672 = vmatprep.subr.mxu0 0.0
    %1673 = vmatpush2.msra.mxu0 0.0
    %1674 = vmatprep.subr.mxu0 0.0
    %1675 = vmatpush2.msra.mxu0 0.0
    %1676 = vmatprep.subr.mxu0 0.0
    %1677 = vmatpush2.msra.mxu0 0.0
    %1678 = vmatprep.subr.mxu0 0.0
    %1679 = vmatpush2.msra.mxu0 0.0
    %1680 = vmatprep.subr.mxu0 0.0
    %1681 = vmatpush2.msra.mxu0 0.0
    %1682 = vmatprep.subr.mxu0 0.0
    %1683 = vmatpush2.msra.mxu0 0.0
    %1684 = vmatprep.subr.mxu0 0.0
    %1685 = vmatpush2.msra.mxu0 0.0
    %1686 = vmatprep.subr.mxu0 0.0
    %1687 = vmatpush2.msra.mxu0 0.0
    %1688 = vmatprep.subr.mxu0 0.0
    %1689 = vmatpush2.msra.mxu0 0.0
    %1690 = vmatprep.subr.mxu0 0.0
    %1691 = vmatpush2.msra.mxu0 0.0
    %1692 = vmatprep.subr.mxu0 0.0
    %1693 = vmatpush2.msra.mxu0 0.0
    %1694 = vmatprep.subr.mxu0 0.0
    %1695 = vmatpush2.msra.mxu0 0.0
    %1696 = vmatprep.mubr.f32.mxu0 0.0
    %1697 = vmatmul.mubr.f32.gmra.mxu0 %v1630
    %v1698 = vpop.f32.mrf.mxu0
    %v1699 = vadd.f32 %v1628, %v1698
    %v1700 = vpop.f32.mrf.mxu0
    %1701 = vdwg.mxu0
    %1702 = vst [vmem:[#allocation5] sm:$0x3] %v1699
    // Predicated region
    $region18: #{tpu_custom_call.1} parent=1 // pred_check
      _
    $region19: #{tpu_custom_call.1} parent=1 // pred_check_branch
      %1704 = sbr.rel (0) target = $region21
    $region20: #{tpu_custom_call.1} parent=1 // pred_region
      %s1706 = ssub.s32 32, 32
      %1707 = vsyncadd [#allocation4], %s1706
      %s1709 = sshll.u32 [#allocation5], 4
      %s1710 = int_to_ptr.vmem [resolvable:$true] %s1709
      %1712 = dma.vmem_to_hbm [thread:$0]  %s1710, 32, %s3, [#allocation4]
    $region21: #{tpu_custom_call.1} parent=1 // pred_fallthru
      _
    // Predicated region
    $region22: #{tpu_custom_call.1} parent=1 // pred_check
      _
    $region23: #{tpu_custom_call.1} parent=1 // pred_check_branch
      %1714 = sbr.rel (0) target = $region25
    $region24: #{tpu_custom_call.1} parent=1 // pred_region
      %1715 = dma.done [#allocation4], 32
    $region25: #{tpu_custom_call.1} parent=1 // pred_fallthru
      _
    %1716 = vsyncpa [#allocation3], 1
    %1717 = vsyncpa [#allocation4], 1

</llo_original>
